<compile_context>
chip_gen: v7x
topology: tpu7x:2x2x1
jax: 0.10.0
libtpu: 0.0.40
codegen_flags: <defaults>
</compile_context>

<pallas_src>
import functools
import math

import jax
import jax.numpy as jnp
import numpy as np
from jax.experimental import pallas as pl
from jax.experimental.pallas import tpu as pltpu


def _ensemble_kernel(x_ref, w1_ref, b1_ref, wdf_ref, bd_ref, w2_ref, b2_ref,
                     out_ref, *, M, K, DIL, W, WP, H, Bt,
                     valid_lo, valid_hi, need_mask):
    """One batch block (Bt elements): run all M sub-models, write ensemble mean.

    x_ref:   (4, Bt*WP)   cropped input window, channels-first, batches
                          concatenated along lanes (WP = W + 2*pad)
    w1_ref:  (M, H, 4)    first pointwise conv weights (transposed), f32
    b1_ref:  (M, H, 1)    f32
    wdf_ref: (M, H, K*H)  fused dilated-conv tap weights (transposed), bf16
    bd_ref:  (M, H, 1)    f32
    w2_ref:  (M, 3, H)    output pointwise conv weights (transposed), bf16
    b2_ref:  (M, 3, 1)    f32
    out_ref: (3, Bt*W)    ensemble-mean probabilities (lane-dense)
    """
    pad = (K // 2) * DIL
    L = Bt * WP          # lanes of input / first-conv activations
    LW = Bt * W          # lanes of output

    xw = x_ref[...]                                   # (4, Bt*WP) f32
    # Hoisted loop invariants.
    x_rows = [xw[c:c + 1, :] for c in range(4)]       # each (1, Bt*WP)

    if need_mask:
        # Only needed when the cropped window touches the zero-pad region of
        # the (post-ReLU) activations; a static wrapper-side decision.
        local = jax.lax.broadcasted_iota(jnp.int32, (1, L), 1) % WP
        pad_mask = jnp.logical_and(local >= valid_lo, local < valid_hi)

    def model_body(m, acc):
        # --- pointwise conv (contraction dim = 4) as VPU broadcast FMAs ---
        w1 = w1_ref[m]                                # (H, 4) f32
        y = jnp.broadcast_to(b1_ref[m], (H, L))       # bias
        for c in range(4):
            y = y + w1[:, c:c + 1] * x_rows[c]
        y = jnp.maximum(y, 0.0)                       # (H, Bt*WP)
        if need_mask:
            # Exact zero-padding semantics of the reference ("same" padding of
            # the post-ReLU activations).
            y = jnp.where(pad_mask, y, 0.0)

        # --- dilated conv: fuse the K taps into ONE MXU matmul ---
        # Stack the K shifted slices (per batch window) along sublanes so the
        # contraction is K*H instead of H.
        stack = jnp.concatenate(
            [jnp.concatenate(
                [y[:, b * WP + k * DIL: b * WP + k * DIL + W]
                 for b in range(Bt)], axis=1)
             for k in range(K)], axis=0)              # (K*H, Bt*W)
        z = jnp.dot(wdf_ref[m], stack.astype(jnp.bfloat16),
                    preferred_element_type=jnp.float32) + bd_ref[m]  # (H, Bt*W)

        # Residual add uses the f32 activations (center W columns per batch).
        y_mid = jnp.concatenate(
            [y[:, b * WP + pad: b * WP + pad + W] for b in range(Bt)], axis=1)
        r = jnp.maximum(z, 0.0) + y_mid               # (H, Bt*W) f32

        # --- 3-class conv + softmax (bf16 MXU operands, f32 accumulate) ---
        logits = jnp.dot(w2_ref[m], r.astype(jnp.bfloat16),
                         preferred_element_type=jnp.float32) + b2_ref[m]
        mx = jnp.max(logits, axis=0, keepdims=True)
        e = jnp.exp(logits - mx)
        inv = pl.reciprocal(jnp.sum(e, axis=0, keepdims=True), approx=True)
        return acc + e * inv                          # raw sum over models

    acc0 = jnp.zeros((3, LW), jnp.float32)
    acc = jax.lax.fori_loop(0, M, model_body, acc0, unroll=True)

    # Single 1/M scale + single lane-dense store per batch block.
    out_ref[...] = (acc * (1.0 / M)).astype(out_ref.dtype)


def splice_ai_ensemble_forward(x_ncw, params, window_size):
    """Equivalent of SpliceAIEnsemble.forward.

    x_ncw:   (B, 4, S) float32, PyTorch NCW layout.
    params:  dict of stacked per-model parameters (leading dim = n_models).
    Returns (combined_predictions (B, 3, window_size), None, None).
    """
    w1, b1, wd, bd, w2, b2 = (params["w1"], params["b1"], params["wd"],
                              params["bd"], params["w2"], params["b2"])
    M, _, H = w1.shape
    K = wd.shape[1]
    B, C, S = x_ncw.shape
    W = window_size
    DIL = params["dilation"]
    assert C == 4 and (S - W) % 2 == 0 and K % 2 == 1

    pad = (K // 2) * DIL
    WP = W + 2 * pad
    crop = (S - W) // 2

    # ---- crop hoist: only [crop-pad, crop+W+pad) of the sequence is needed ----
    lo = crop - pad
    hi = crop + W + pad
    pad_left = max(0, -lo)
    pad_right = max(0, hi - S)
    x_f32 = x_ncw.astype(jnp.float32)
    if pad_left or pad_right:
        x_f32 = jnp.pad(x_f32, ((0, 0), (0, 0), (pad_left, pad_right)))
    x_win = jax.lax.slice_in_dim(x_f32, lo + pad_left, lo + pad_left + WP,
                                 axis=2)                        # (B, 4, WP)
    # Window-local valid range of the (post-ReLU) activation zero-padding.
    valid_lo = max(0, -lo)
    valid_hi = min(WP, S - lo)
    need_mask = (valid_lo > 0) or (valid_hi < WP)

    # ---- batch blocking: Bt elements per grid step, concatenated along lanes ----
    Bt = 1
    for cand in (8, 4, 2, 1):
        if B % cand == 0:
            Bt = cand
            break
    G = B // Bt
    x_blk = (x_win.reshape(G, Bt, 4, WP)
                  .transpose(0, 2, 1, 3)
                  .reshape(G, 4, Bt * WP))                      # (G, 4, Bt*WP)

    # ---- channels-first weight layouts (tiny one-time XLA transposes) ----
    w1t = jnp.transpose(w1, (0, 2, 1)).astype(jnp.float32)      # (M, H, 4)
    b1t = jnp.transpose(b1, (0, 2, 1)).astype(jnp.float32)      # (M, H, 1)
    # Fused dilated-conv weights: (M, H_out, K*H_in), bf16 MXU operand.
    wdf = jnp.transpose(wd, (0, 3, 1, 2)).reshape(M, H, K * H)
    wdf = wdf.astype(jnp.bfloat16)                              # (M, H, K*H)
    bdt = jnp.transpose(bd, (0, 2, 1)).astype(jnp.float32)      # (M, H, 1)
    w2t = jnp.transpose(w2, (0, 2, 1)).astype(jnp.bfloat16)     # (M, 3, H)
    b2t = jnp.transpose(b2, (0, 2, 1)).astype(jnp.float32)      # (M, 3, 1)

    kernel = functools.partial(_ensemble_kernel,
                               M=M, K=K, DIL=DIL, W=W, WP=WP, H=H, Bt=Bt,
                               valid_lo=valid_lo, valid_hi=valid_hi,
                               need_mask=need_mask)

    const3 = lambda g: (0, 0, 0)

    flops = 2 * B * M * (4 * H * WP + K * H * H * W + 3 * H * W)
    transcendentals = B * M * 3 * W
    bytes_accessed = int(
        4 * (x_blk.size + w1t.size + b1t.size + bdt.size + b2t.size)
        + 2 * (wdf.size + w2t.size) + 4 * B * 3 * W)
    cost = pl.CostEstimate(flops=flops, transcendentals=transcendentals,
                           bytes_accessed=bytes_accessed)

    out = pl.pallas_call(
        kernel,
        out_shape=jax.ShapeDtypeStruct((G, 3, Bt * W), jnp.float32),
        grid=(G,),
        in_specs=[
            # cropped input window, streamed per batch block
            pl.BlockSpec((None, 4, Bt * WP), lambda g: (g, 0, 0)),
            # all M models' weights resident in VMEM (constant index maps)
            pl.BlockSpec((M, H, 4), const3),
            pl.BlockSpec((M, H, 1), const3),
            pl.BlockSpec((M, H, K * H), const3),
            pl.BlockSpec((M, H, 1), const3),
            pl.BlockSpec((M, 3, H), const3),
            pl.BlockSpec((M, 3, 1), const3),
        ],
        out_specs=pl.BlockSpec((None, 3, Bt * W), lambda g: (g, 0, 0)),
        compiler_params=pltpu.CompilerParams(
            dimension_semantics=("parallel",),
            vmem_limit_bytes=32 * 1024 * 1024),
        cost_estimate=cost,
    )(x_blk, w1t, b1t, wdf, bdt, w2t, b2t)                      # (G, 3, Bt*W)

    # Un-concatenate the batch lanes back to the PyTorch (B, 3, W) layout.
    out = (out.reshape(G, 3, Bt, W)
              .transpose(0, 2, 1, 3)
              .reshape(B, 3, W))
    return out, None, None


def _reference_forward(x_ncw, params, window_size):
    """Pure-JAX f32 reference of the same ensemble (for correctness checking)."""
    w1, b1, wd, bd, w2, b2 = (params["w1"], params["b1"], params["wd"],
                              params["bd"], params["w2"], params["b2"])
    DIL = params["dilation"]
    M, K = wd.shape[0], wd.shape[1]
    B, _, S = x_ncw.shape
    W = window_size
    x = jnp.transpose(x_ncw, (0, 2, 1)).astype(jnp.float32)  # (B, S, 4)
    pad = (K // 2) * DIL
    outs = []
    for m in range(M):
        y = jnp.maximum(jnp.einsum("bsc,ch->bsh", x, w1[m]) + b1[m], 0.0)
        y_pad = jnp.pad(y, ((0, 0), (pad, pad), (0, 0)))
        z = jnp.broadcast_to(bd[m], (B, S, bd.shape[-1]))
        for k in range(K):
            z = z + jnp.einsum("bsh,hg->bsg",
                               y_pad[:, k * DIL:k * DIL + S, :], wd[m, k])
        r = jnp.maximum(z, 0.0) + y
        logits = jnp.einsum("bsh,hc->bsc", r, w2[m]) + b2[m]
        probs = jax.nn.softmax(logits, axis=-1)
        crop = (S - W) // 2
        outs.append(jnp.transpose(probs[:, crop:crop + W, :], (0, 2, 1)))
    return jnp.mean(jnp.stack(outs, axis=0), axis=0)


def make_params(key, n_models, hidden, kernel_size, dilation):
    """Deterministic synthetic per-model parameters, stacked over models."""
    ks = jax.random.split(key, 6)
    M, H, K = n_models, hidden, kernel_size
    return {
        "w1": 0.5 * jax.random.normal(ks[0], (M, 4, H), jnp.float32),
        "b1": 0.1 * jax.random.normal(ks[1], (M, 1, H), jnp.float32),
        "wd": (0.2 / math.sqrt(H)) * jax.random.normal(ks[2], (M, K, H, H),
                                                       jnp.float32),
        "bd": 0.1 * jax.random.normal(ks[3], (M, 1, H), jnp.float32),
        "w2": (0.5 / math.sqrt(H)) * jax.random.normal(ks[4], (M, H, 3),
                                                       jnp.float32),
        "b2": 0.1 * jax.random.normal(ks[5], (M, 1, 3), jnp.float32),
        "dilation": dilation,
    }


if __name__ == "__main__":
    key = jax.random.PRNGKey(0)
    k_x, k_p = jax.random.split(key)

    B = 2            # batch
    S = 24           # input sequence length (window + context)
    window_size = 16
    n_models = 3
    hidden = 32
    kernel_size = 3
    dilation = 2

    # PyTorch-style NCW input: (batch, 4 nucleotide channels, seq)
    x = jax.random.normal(k_x, (B, 4, S), jnp.float32)
    params = make_params(k_p, n_models, hidden, kernel_size, dilation)

    combined, aux1, aux2 = splice_ai_ensemble_forward(x, params, window_size)
    combined = jax.block_until_ready(combined)

    assert combined.shape == (B, 3, window_size)
    assert aux1 is None and aux2 is None

    ref = jax.block_until_ready(_reference_forward(x, params, window_size))
    # Tolerance covers the bf16 MXU operands (f32 accumulate) and the EUP
    # approximate reciprocal in the softmax denominator.
    np.testing.assert_allclose(np.asarray(combined), np.asarray(ref),
                               rtol=2e-2, atol=2e-2)

    print("KERNEL_OK")
</pallas_src>

<mosaic_0001>
module attributes {stable_mosaic.version = 11 : i64} {
  func.func @_ensemble_kernel(%arg0: i32, %arg1: memref<1x4x40xf32, #tpu.memory_space<vmem>>, %arg2: memref<3x32x4xf32, #tpu.memory_space<vmem>>, %arg3: memref<3x32x1xf32, #tpu.memory_space<vmem>>, %arg4: memref<3x32x96xbf16, #tpu.memory_space<vmem>>, %arg5: memref<3x32x1xf32, #tpu.memory_space<vmem>>, %arg6: memref<3x3x32xbf16, #tpu.memory_space<vmem>>, %arg7: memref<3x3x1xf32, #tpu.memory_space<vmem>>, %arg8: memref<1x3x32xf32, #tpu.memory_space<vmem>>) attributes {dimension_semantics = [#tpu.dimension_semantics<parallel>], iteration_bounds = array<i64: 1>, scalar_prefetch = 0 : i64, scratch_operands = 0 : i64, tpu.core_type = #tpu.core_type<tc>, window_params = [{transform_indices = @transform_0, window_bounds = array<i64: 1, 4, 40>}, {pipeline_mode = #tpu.pipeline_mode<synchronous>, transform_indices = @transform_1, window_bounds = array<i64: 3, 32, 4>}, {pipeline_mode = #tpu.pipeline_mode<synchronous>, transform_indices = @transform_2, window_bounds = array<i64: 3, 32, 1>}, {pipeline_mode = #tpu.pipeline_mode<synchronous>, transform_indices = @transform_3, window_bounds = array<i64: 3, 32, 96>}, {pipeline_mode = #tpu.pipeline_mode<synchronous>, transform_indices = @transform_4, window_bounds = array<i64: 3, 32, 1>}, {pipeline_mode = #tpu.pipeline_mode<synchronous>, transform_indices = @transform_5, window_bounds = array<i64: 3, 3, 32>}, {pipeline_mode = #tpu.pipeline_mode<synchronous>, transform_indices = @transform_6, window_bounds = array<i64: 3, 3, 1>}, {transform_indices = @transform_7, window_bounds = array<i64: 1, 3, 32>}]} {
    %c0 = arith.constant 0 : index
    %c0_0 = arith.constant 0 : index
    %c0_1 = arith.constant 0 : index
    %0 = vector.load %arg1[%c0, %c0_0, %c0_1] : memref<1x4x40xf32, #tpu.memory_space<vmem>>, vector<1x4x40xf32>
    %1 = vector.shape_cast %0 : vector<1x4x40xf32> to vector<4x40xf32>
    %2 = vector.extract_strided_slice %1 {offsets = [0, 0], sizes = [1, 40], strides = [1, 1]} : vector<4x40xf32> to vector<1x40xf32>
    %3 = vector.extract_strided_slice %1 {offsets = [1, 0], sizes = [1, 40], strides = [1, 1]} : vector<4x40xf32> to vector<1x40xf32>
    %4 = vector.extract_strided_slice %1 {offsets = [2, 0], sizes = [1, 40], strides = [1, 1]} : vector<4x40xf32> to vector<1x40xf32>
    %5 = vector.extract_strided_slice %1 {offsets = [3, 0], sizes = [1, 40], strides = [1, 1]} : vector<4x40xf32> to vector<1x40xf32>
    %cst = arith.constant 0.000000e+00 : f32
    %6 = vector.broadcast %cst : f32 to vector<3x32xf32>
    %c0_i32 = arith.constant 0 : i32
    %7 = arith.index_cast %c0_i32 : i32 to index
    %c0_2 = arith.constant 0 : index
    %c0_3 = arith.constant 0 : index
    %8 = vector.load %arg2[%7, %c0_2, %c0_3] : memref<3x32x4xf32, #tpu.memory_space<vmem>>, vector<1x32x4xf32>
    %9 = vector.shape_cast %8 : vector<1x32x4xf32> to vector<32x4xf32>
    %10 = arith.index_cast %c0_i32 : i32 to index
    %c0_4 = arith.constant 0 : index
    %c0_5 = arith.constant 0 : index
    %11 = vector.load %arg3[%10, %c0_4, %c0_5] : memref<3x32x1xf32, #tpu.memory_space<vmem>>, vector<1x32x1xf32>
    %12 = vector.shape_cast %11 : vector<1x32x1xf32> to vector<32x1xf32>
    %13 = vector.shape_cast %12 : vector<32x1xf32> to vector<32x1xf32>
    %14 = vector.broadcast %13 : vector<32x1xf32> to vector<32x40xf32>
    %15 = vector.extract_strided_slice %9 {offsets = [0, 0], sizes = [32, 1], strides = [1, 1]} : vector<32x4xf32> to vector<32x1xf32>
    %16 = vector.broadcast %15 : vector<32x1xf32> to vector<32x40xf32>
    %17 = vector.broadcast %2 : vector<1x40xf32> to vector<32x40xf32>
    %18 = arith.mulf %16, %17 : vector<32x40xf32>
    %19 = arith.addf %14, %18 : vector<32x40xf32>
    %20 = vector.extract_strided_slice %9 {offsets = [0, 1], sizes = [32, 1], strides = [1, 1]} : vector<32x4xf32> to vector<32x1xf32>
    %21 = vector.broadcast %20 : vector<32x1xf32> to vector<32x40xf32>
    %22 = vector.broadcast %3 : vector<1x40xf32> to vector<32x40xf32>
    %23 = arith.mulf %21, %22 : vector<32x40xf32>
    %24 = arith.addf %19, %23 : vector<32x40xf32>
    %25 = vector.extract_strided_slice %9 {offsets = [0, 2], sizes = [32, 1], strides = [1, 1]} : vector<32x4xf32> to vector<32x1xf32>
    %26 = vector.broadcast %25 : vector<32x1xf32> to vector<32x40xf32>
    %27 = vector.broadcast %4 : vector<1x40xf32> to vector<32x40xf32>
    %28 = arith.mulf %26, %27 : vector<32x40xf32>
    %29 = arith.addf %24, %28 : vector<32x40xf32>
    %30 = vector.extract_strided_slice %9 {offsets = [0, 3], sizes = [32, 1], strides = [1, 1]} : vector<32x4xf32> to vector<32x1xf32>
    %31 = vector.broadcast %30 : vector<32x1xf32> to vector<32x40xf32>
    %32 = vector.broadcast %5 : vector<1x40xf32> to vector<32x40xf32>
    %33 = arith.mulf %31, %32 : vector<32x40xf32>
    %34 = arith.addf %29, %33 : vector<32x40xf32>
    %cst_6 = arith.constant 0.000000e+00 : f32
    %35 = vector.broadcast %cst_6 : f32 to vector<32x40xf32>
    %36 = arith.maximumf %34, %35 : vector<32x40xf32>
    %37 = vector.extract_strided_slice %36 {offsets = [0, 0], sizes = [32, 16], strides = [1, 1]} : vector<32x40xf32> to vector<32x16xf32>
    %38 = vector.extract_strided_slice %36 {offsets = [0, 20], sizes = [32, 16], strides = [1, 1]} : vector<32x40xf32> to vector<32x16xf32>
    %39 = tpu.concatenate %37, %38 in 1 : vector<32x16xf32>, vector<32x16xf32> -> vector<32x32xf32>
    %40 = vector.extract_strided_slice %36 {offsets = [0, 2], sizes = [32, 16], strides = [1, 1]} : vector<32x40xf32> to vector<32x16xf32>
    %41 = vector.extract_strided_slice %36 {offsets = [0, 22], sizes = [32, 16], strides = [1, 1]} : vector<32x40xf32> to vector<32x16xf32>
    %42 = tpu.concatenate %40, %41 in 1 : vector<32x16xf32>, vector<32x16xf32> -> vector<32x32xf32>
    %43 = vector.extract_strided_slice %36 {offsets = [0, 4], sizes = [32, 16], strides = [1, 1]} : vector<32x40xf32> to vector<32x16xf32>
    %44 = vector.extract_strided_slice %36 {offsets = [0, 24], sizes = [32, 16], strides = [1, 1]} : vector<32x40xf32> to vector<32x16xf32>
    %45 = tpu.concatenate %43, %44 in 1 : vector<32x16xf32>, vector<32x16xf32> -> vector<32x32xf32>
    %46 = tpu.concatenate %39, %42, %45 in 0 : vector<32x32xf32>, vector<32x32xf32>, vector<32x32xf32> -> vector<96x32xf32>
    %47 = arith.index_cast %c0_i32 : i32 to index
    %c0_7 = arith.constant 0 : index
    %c0_8 = arith.constant 0 : index
    %48 = vector.load %arg4[%47, %c0_7, %c0_8] : memref<3x32x96xbf16, #tpu.memory_space<vmem>>, vector<1x32x96xbf16>
    %49 = vector.shape_cast %48 : vector<1x32x96xbf16> to vector<32x96xbf16>
    %50 = arith.truncf %46 : vector<96x32xf32> to vector<96x32xbf16>
    %cst_9 = arith.constant dense<0.000000e+00> : vector<32x32xf32>
    %51 = tpu.matmul %49, %50, %cst_9 {dimension_numbers = #tpu.dot_dimension_numbers<[1], [0], [0], [1], [0, 0, 1, 1], [], []>} : vector<32x96xbf16>, vector<96x32xbf16>, vector<32x32xf32> -> vector<32x32xf32>
    %52 = arith.index_cast %c0_i32 : i32 to index
    %c0_10 = arith.constant 0 : index
    %c0_11 = arith.constant 0 : index
    %53 = vector.load %arg5[%52, %c0_10, %c0_11] : memref<3x32x1xf32, #tpu.memory_space<vmem>>, vector<1x32x1xf32>
    %54 = vector.shape_cast %53 : vector<1x32x1xf32> to vector<32x1xf32>
    %55 = vector.broadcast %54 : vector<32x1xf32> to vector<32x32xf32>
    %56 = arith.addf %51, %55 : vector<32x32xf32>
    %57 = vector.extract_strided_slice %36 {offsets = [0, 2], sizes = [32, 16], strides = [1, 1]} : vector<32x40xf32> to vector<32x16xf32>
    %58 = vector.extract_strided_slice %36 {offsets = [0, 22], sizes = [32, 16], strides = [1, 1]} : vector<32x40xf32> to vector<32x16xf32>
    %59 = tpu.concatenate %57, %58 in 1 : vector<32x16xf32>, vector<32x16xf32> -> vector<32x32xf32>
    %cst_12 = arith.constant 0.000000e+00 : f32
    %60 = vector.broadcast %cst_12 : f32 to vector<32x32xf32>
    %61 = arith.maximumf %56, %60 : vector<32x32xf32>
    %62 = arith.addf %61, %59 : vector<32x32xf32>
    %63 = arith.index_cast %c0_i32 : i32 to index
    %c0_13 = arith.constant 0 : index
    %c0_14 = arith.constant 0 : index
    %64 = vector.load %arg6[%63, %c0_13, %c0_14] : memref<3x3x32xbf16, #tpu.memory_space<vmem>>, vector<1x3x32xbf16>
    %65 = vector.shape_cast %64 : vector<1x3x32xbf16> to vector<3x32xbf16>
    %66 = arith.truncf %62 : vector<32x32xf32> to vector<32x32xbf16>
    %cst_15 = arith.constant dense<0.000000e+00> : vector<3x32xf32>
    %67 = tpu.matmul %65, %66, %cst_15 {dimension_numbers = #tpu.dot_dimension_numbers<[1], [0], [0], [1], [0, 0, 1, 1], [], []>} : vector<3x32xbf16>, vector<32x32xbf16>, vector<3x32xf32> -> vector<3x32xf32>
    %68 = arith.index_cast %c0_i32 : i32 to index
    %c0_16 = arith.constant 0 : index
    %c0_17 = arith.constant 0 : index
    %69 = vector.load %arg7[%68, %c0_16, %c0_17] : memref<3x3x1xf32, #tpu.memory_space<vmem>>, vector<1x3x1xf32>
    %70 = vector.shape_cast %69 : vector<1x3x1xf32> to vector<3x1xf32>
    %71 = vector.broadcast %70 : vector<3x1xf32> to vector<3x32xf32>
    %72 = arith.addf %67, %71 : vector<3x32xf32>
    %cst_18 = arith.constant dense<0xFF800000> : vector<32xf32>
    %73 = vector.multi_reduction <maximumf>, %72, %cst_18 [0] : vector<3x32xf32> to vector<32xf32>
    %74 = vector.shape_cast %73 : vector<32xf32> to vector<1x32xf32>
    %75 = vector.broadcast %74 : vector<1x32xf32> to vector<3x32xf32>
    %76 = arith.subf %72, %75 : vector<3x32xf32>
    %77 = math.exp %76 : vector<3x32xf32>
    %cst_19 = arith.constant dense<0.000000e+00> : vector<32xf32>
    %78 = vector.multi_reduction <add>, %77, %cst_19 [0] : vector<3x32xf32> to vector<32xf32>
    %79 = vector.shape_cast %78 : vector<32xf32> to vector<1x32xf32>
    %80 = tpu.reciprocal %79 {approx = true} : vector<1x32xf32> -> vector<1x32xf32>
    %81 = vector.broadcast %80 : vector<1x32xf32> to vector<3x32xf32>
    %82 = arith.mulf %77, %81 : vector<3x32xf32>
    %83 = arith.addf %6, %82 : vector<3x32xf32>
    %c1_i32 = arith.constant 1 : i32
    %84 = arith.index_cast %c1_i32 : i32 to index
    %c0_20 = arith.constant 0 : index
    %c0_21 = arith.constant 0 : index
    %85 = vector.load %arg2[%84, %c0_20, %c0_21] : memref<3x32x4xf32, #tpu.memory_space<vmem>>, vector<1x32x4xf32>
    %86 = vector.shape_cast %85 : vector<1x32x4xf32> to vector<32x4xf32>
    %87 = arith.index_cast %c1_i32 : i32 to index
    %c0_22 = arith.constant 0 : index
    %c0_23 = arith.constant 0 : index
    %88 = vector.load %arg3[%87, %c0_22, %c0_23] : memref<3x32x1xf32, #tpu.memory_space<vmem>>, vector<1x32x1xf32>
    %89 = vector.shape_cast %88 : vector<1x32x1xf32> to vector<32x1xf32>
    %90 = vector.shape_cast %89 : vector<32x1xf32> to vector<32x1xf32>
    %91 = vector.broadcast %90 : vector<32x1xf32> to vector<32x40xf32>
    %92 = vector.extract_strided_slice %86 {offsets = [0, 0], sizes = [32, 1], strides = [1, 1]} : vector<32x4xf32> to vector<32x1xf32>
    %93 = vector.broadcast %92 : vector<32x1xf32> to vector<32x40xf32>
    %94 = vector.broadcast %2 : vector<1x40xf32> to vector<32x40xf32>
    %95 = arith.mulf %93, %94 : vector<32x40xf32>
    %96 = arith.addf %91, %95 : vector<32x40xf32>
    %97 = vector.extract_strided_slice %86 {offsets = [0, 1], sizes = [32, 1], strides = [1, 1]} : vector<32x4xf32> to vector<32x1xf32>
    %98 = vector.broadcast %97 : vector<32x1xf32> to vector<32x40xf32>
    %99 = vector.broadcast %3 : vector<1x40xf32> to vector<32x40xf32>
    %100 = arith.mulf %98, %99 : vector<32x40xf32>
    %101 = arith.addf %96, %100 : vector<32x40xf32>
    %102 = vector.extract_strided_slice %86 {offsets = [0, 2], sizes = [32, 1], strides = [1, 1]} : vector<32x4xf32> to vector<32x1xf32>
    %103 = vector.broadcast %102 : vector<32x1xf32> to vector<32x40xf32>
    %104 = vector.broadcast %4 : vector<1x40xf32> to vector<32x40xf32>
    %105 = arith.mulf %103, %104 : vector<32x40xf32>
    %106 = arith.addf %101, %105 : vector<32x40xf32>
    %107 = vector.extract_strided_slice %86 {offsets = [0, 3], sizes = [32, 1], strides = [1, 1]} : vector<32x4xf32> to vector<32x1xf32>
    %108 = vector.broadcast %107 : vector<32x1xf32> to vector<32x40xf32>
    %109 = vector.broadcast %5 : vector<1x40xf32> to vector<32x40xf32>
    %110 = arith.mulf %108, %109 : vector<32x40xf32>
    %111 = arith.addf %106, %110 : vector<32x40xf32>
    %cst_24 = arith.constant 0.000000e+00 : f32
    %112 = vector.broadcast %cst_24 : f32 to vector<32x40xf32>
    %113 = arith.maximumf %111, %112 : vector<32x40xf32>
    %114 = vector.extract_strided_slice %113 {offsets = [0, 0], sizes = [32, 16], strides = [1, 1]} : vector<32x40xf32> to vector<32x16xf32>
    %115 = vector.extract_strided_slice %113 {offsets = [0, 20], sizes = [32, 16], strides = [1, 1]} : vector<32x40xf32> to vector<32x16xf32>
    %116 = tpu.concatenate %114, %115 in 1 : vector<32x16xf32>, vector<32x16xf32> -> vector<32x32xf32>
    %117 = vector.extract_strided_slice %113 {offsets = [0, 2], sizes = [32, 16], strides = [1, 1]} : vector<32x40xf32> to vector<32x16xf32>
    %118 = vector.extract_strided_slice %113 {offsets = [0, 22], sizes = [32, 16], strides = [1, 1]} : vector<32x40xf32> to vector<32x16xf32>
    %119 = tpu.concatenate %117, %118 in 1 : vector<32x16xf32>, vector<32x16xf32> -> vector<32x32xf32>
    %120 = vector.extract_strided_slice %113 {offsets = [0, 4], sizes = [32, 16], strides = [1, 1]} : vector<32x40xf32> to vector<32x16xf32>
    %121 = vector.extract_strided_slice %113 {offsets = [0, 24], sizes = [32, 16], strides = [1, 1]} : vector<32x40xf32> to vector<32x16xf32>
    %122 = tpu.concatenate %120, %121 in 1 : vector<32x16xf32>, vector<32x16xf32> -> vector<32x32xf32>
    %123 = tpu.concatenate %116, %119, %122 in 0 : vector<32x32xf32>, vector<32x32xf32>, vector<32x32xf32> -> vector<96x32xf32>
    %124 = arith.index_cast %c1_i32 : i32 to index
    %c0_25 = arith.constant 0 : index
    %c0_26 = arith.constant 0 : index
    %125 = vector.load %arg4[%124, %c0_25, %c0_26] : memref<3x32x96xbf16, #tpu.memory_space<vmem>>, vector<1x32x96xbf16>
    %126 = vector.shape_cast %125 : vector<1x32x96xbf16> to vector<32x96xbf16>
    %127 = arith.truncf %123 : vector<96x32xf32> to vector<96x32xbf16>
    %cst_27 = arith.constant dense<0.000000e+00> : vector<32x32xf32>
    %128 = tpu.matmul %126, %127, %cst_27 {dimension_numbers = #tpu.dot_dimension_numbers<[1], [0], [0], [1], [0, 0, 1, 1], [], []>} : vector<32x96xbf16>, vector<96x32xbf16>, vector<32x32xf32> -> vector<32x32xf32>
    %129 = arith.index_cast %c1_i32 : i32 to index
    %c0_28 = arith.constant 0 : index
    %c0_29 = arith.constant 0 : index
    %130 = vector.load %arg5[%129, %c0_28, %c0_29] : memref<3x32x1xf32, #tpu.memory_space<vmem>>, vector<1x32x1xf32>
    %131 = vector.shape_cast %130 : vector<1x32x1xf32> to vector<32x1xf32>
    %132 = vector.broadcast %131 : vector<32x1xf32> to vector<32x32xf32>
    %133 = arith.addf %128, %132 : vector<32x32xf32>
    %134 = vector.extract_strided_slice %113 {offsets = [0, 2], sizes = [32, 16], strides = [1, 1]} : vector<32x40xf32> to vector<32x16xf32>
    %135 = vector.extract_strided_slice %113 {offsets = [0, 22], sizes = [32, 16], strides = [1, 1]} : vector<32x40xf32> to vector<32x16xf32>
    %136 = tpu.concatenate %134, %135 in 1 : vector<32x16xf32>, vector<32x16xf32> -> vector<32x32xf32>
    %cst_30 = arith.constant 0.000000e+00 : f32
    %137 = vector.broadcast %cst_30 : f32 to vector<32x32xf32>
    %138 = arith.maximumf %133, %137 : vector<32x32xf32>
    %139 = arith.addf %138, %136 : vector<32x32xf32>
    %140 = arith.index_cast %c1_i32 : i32 to index
    %c0_31 = arith.constant 0 : index
    %c0_32 = arith.constant 0 : index
    %141 = vector.load %arg6[%140, %c0_31, %c0_32] : memref<3x3x32xbf16, #tpu.memory_space<vmem>>, vector<1x3x32xbf16>
    %142 = vector.shape_cast %141 : vector<1x3x32xbf16> to vector<3x32xbf16>
    %143 = arith.truncf %139 : vector<32x32xf32> to vector<32x32xbf16>
    %cst_33 = arith.constant dense<0.000000e+00> : vector<3x32xf32>
    %144 = tpu.matmul %142, %143, %cst_33 {dimension_numbers = #tpu.dot_dimension_numbers<[1], [0], [0], [1], [0, 0, 1, 1], [], []>} : vector<3x32xbf16>, vector<32x32xbf16>, vector<3x32xf32> -> vector<3x32xf32>
    %145 = arith.index_cast %c1_i32 : i32 to index
    %c0_34 = arith.constant 0 : index
    %c0_35 = arith.constant 0 : index
    %146 = vector.load %arg7[%145, %c0_34, %c0_35] : memref<3x3x1xf32, #tpu.memory_space<vmem>>, vector<1x3x1xf32>
    %147 = vector.shape_cast %146 : vector<1x3x1xf32> to vector<3x1xf32>
    %148 = vector.broadcast %147 : vector<3x1xf32> to vector<3x32xf32>
    %149 = arith.addf %144, %148 : vector<3x32xf32>
    %cst_36 = arith.constant dense<0xFF800000> : vector<32xf32>
    %150 = vector.multi_reduction <maximumf>, %149, %cst_36 [0] : vector<3x32xf32> to vector<32xf32>
    %151 = vector.shape_cast %150 : vector<32xf32> to vector<1x32xf32>
    %152 = vector.broadcast %151 : vector<1x32xf32> to vector<3x32xf32>
    %153 = arith.subf %149, %152 : vector<3x32xf32>
    %154 = math.exp %153 : vector<3x32xf32>
    %cst_37 = arith.constant dense<0.000000e+00> : vector<32xf32>
    %155 = vector.multi_reduction <add>, %154, %cst_37 [0] : vector<3x32xf32> to vector<32xf32>
    %156 = vector.shape_cast %155 : vector<32xf32> to vector<1x32xf32>
    %157 = tpu.reciprocal %156 {approx = true} : vector<1x32xf32> -> vector<1x32xf32>
    %158 = vector.broadcast %157 : vector<1x32xf32> to vector<3x32xf32>
    %159 = arith.mulf %154, %158 : vector<3x32xf32>
    %160 = arith.addf %83, %159 : vector<3x32xf32>
    %c2_i32 = arith.constant 2 : i32
    %161 = arith.index_cast %c2_i32 : i32 to index
    %c0_38 = arith.constant 0 : index
    %c0_39 = arith.constant 0 : index
    %162 = vector.load %arg2[%161, %c0_38, %c0_39] : memref<3x32x4xf32, #tpu.memory_space<vmem>>, vector<1x32x4xf32>
    %163 = vector.shape_cast %162 : vector<1x32x4xf32> to vector<32x4xf32>
    %164 = arith.index_cast %c2_i32 : i32 to index
    %c0_40 = arith.constant 0 : index
    %c0_41 = arith.constant 0 : index
    %165 = vector.load %arg3[%164, %c0_40, %c0_41] : memref<3x32x1xf32, #tpu.memory_space<vmem>>, vector<1x32x1xf32>
    %166 = vector.shape_cast %165 : vector<1x32x1xf32> to vector<32x1xf32>
    %167 = vector.shape_cast %166 : vector<32x1xf32> to vector<32x1xf32>
    %168 = vector.broadcast %167 : vector<32x1xf32> to vector<32x40xf32>
    %169 = vector.extract_strided_slice %163 {offsets = [0, 0], sizes = [32, 1], strides = [1, 1]} : vector<32x4xf32> to vector<32x1xf32>
    %170 = vector.broadcast %169 : vector<32x1xf32> to vector<32x40xf32>
    %171 = vector.broadcast %2 : vector<1x40xf32> to vector<32x40xf32>
    %172 = arith.mulf %170, %171 : vector<32x40xf32>
    %173 = arith.addf %168, %172 : vector<32x40xf32>
    %174 = vector.extract_strided_slice %163 {offsets = [0, 1], sizes = [32, 1], strides = [1, 1]} : vector<32x4xf32> to vector<32x1xf32>
    %175 = vector.broadcast %174 : vector<32x1xf32> to vector<32x40xf32>
    %176 = vector.broadcast %3 : vector<1x40xf32> to vector<32x40xf32>
    %177 = arith.mulf %175, %176 : vector<32x40xf32>
    %178 = arith.addf %173, %177 : vector<32x40xf32>
    %179 = vector.extract_strided_slice %163 {offsets = [0, 2], sizes = [32, 1], strides = [1, 1]} : vector<32x4xf32> to vector<32x1xf32>
    %180 = vector.broadcast %179 : vector<32x1xf32> to vector<32x40xf32>
    %181 = vector.broadcast %4 : vector<1x40xf32> to vector<32x40xf32>
    %182 = arith.mulf %180, %181 : vector<32x40xf32>
    %183 = arith.addf %178, %182 : vector<32x40xf32>
    %184 = vector.extract_strided_slice %163 {offsets = [0, 3], sizes = [32, 1], strides = [1, 1]} : vector<32x4xf32> to vector<32x1xf32>
    %185 = vector.broadcast %184 : vector<32x1xf32> to vector<32x40xf32>
    %186 = vector.broadcast %5 : vector<1x40xf32> to vector<32x40xf32>
    %187 = arith.mulf %185, %186 : vector<32x40xf32>
    %188 = arith.addf %183, %187 : vector<32x40xf32>
    %cst_42 = arith.constant 0.000000e+00 : f32
    %189 = vector.broadcast %cst_42 : f32 to vector<32x40xf32>
    %190 = arith.maximumf %188, %189 : vector<32x40xf32>
    %191 = vector.extract_strided_slice %190 {offsets = [0, 0], sizes = [32, 16], strides = [1, 1]} : vector<32x40xf32> to vector<32x16xf32>
    %192 = vector.extract_strided_slice %190 {offsets = [0, 20], sizes = [32, 16], strides = [1, 1]} : vector<32x40xf32> to vector<32x16xf32>
    %193 = tpu.concatenate %191, %192 in 1 : vector<32x16xf32>, vector<32x16xf32> -> vector<32x32xf32>
    %194 = vector.extract_strided_slice %190 {offsets = [0, 2], sizes = [32, 16], strides = [1, 1]} : vector<32x40xf32> to vector<32x16xf32>
    %195 = vector.extract_strided_slice %190 {offsets = [0, 22], sizes = [32, 16], strides = [1, 1]} : vector<32x40xf32> to vector<32x16xf32>
    %196 = tpu.concatenate %194, %195 in 1 : vector<32x16xf32>, vector<32x16xf32> -> vector<32x32xf32>
    %197 = vector.extract_strided_slice %190 {offsets = [0, 4], sizes = [32, 16], strides = [1, 1]} : vector<32x40xf32> to vector<32x16xf32>
    %198 = vector.extract_strided_slice %190 {offsets = [0, 24], sizes = [32, 16], strides = [1, 1]} : vector<32x40xf32> to vector<32x16xf32>
    %199 = tpu.concatenate %197, %198 in 1 : vector<32x16xf32>, vector<32x16xf32> -> vector<32x32xf32>
    %200 = tpu.concatenate %193, %196, %199 in 0 : vector<32x32xf32>, vector<32x32xf32>, vector<32x32xf32> -> vector<96x32xf32>
    %201 = arith.index_cast %c2_i32 : i32 to index
    %c0_43 = arith.constant 0 : index
    %c0_44 = arith.constant 0 : index
    %202 = vector.load %arg4[%201, %c0_43, %c0_44] : memref<3x32x96xbf16, #tpu.memory_space<vmem>>, vector<1x32x96xbf16>
    %203 = vector.shape_cast %202 : vector<1x32x96xbf16> to vector<32x96xbf16>
    %204 = arith.truncf %200 : vector<96x32xf32> to vector<96x32xbf16>
    %cst_45 = arith.constant dense<0.000000e+00> : vector<32x32xf32>
    %205 = tpu.matmul %203, %204, %cst_45 {dimension_numbers = #tpu.dot_dimension_numbers<[1], [0], [0], [1], [0, 0, 1, 1], [], []>} : vector<32x96xbf16>, vector<96x32xbf16>, vector<32x32xf32> -> vector<32x32xf32>
    %206 = arith.index_cast %c2_i32 : i32 to index
    %c0_46 = arith.constant 0 : index
    %c0_47 = arith.constant 0 : index
    %207 = vector.load %arg5[%206, %c0_46, %c0_47] : memref<3x32x1xf32, #tpu.memory_space<vmem>>, vector<1x32x1xf32>
    %208 = vector.shape_cast %207 : vector<1x32x1xf32> to vector<32x1xf32>
    %209 = vector.broadcast %208 : vector<32x1xf32> to vector<32x32xf32>
    %210 = arith.addf %205, %209 : vector<32x32xf32>
    %211 = vector.extract_strided_slice %190 {offsets = [0, 2], sizes = [32, 16], strides = [1, 1]} : vector<32x40xf32> to vector<32x16xf32>
    %212 = vector.extract_strided_slice %190 {offsets = [0, 22], sizes = [32, 16], strides = [1, 1]} : vector<32x40xf32> to vector<32x16xf32>
    %213 = tpu.concatenate %211, %212 in 1 : vector<32x16xf32>, vector<32x16xf32> -> vector<32x32xf32>
    %cst_48 = arith.constant 0.000000e+00 : f32
    %214 = vector.broadcast %cst_48 : f32 to vector<32x32xf32>
    %215 = arith.maximumf %210, %214 : vector<32x32xf32>
    %216 = arith.addf %215, %213 : vector<32x32xf32>
    %217 = arith.index_cast %c2_i32 : i32 to index
    %c0_49 = arith.constant 0 : index
    %c0_50 = arith.constant 0 : index
    %218 = vector.load %arg6[%217, %c0_49, %c0_50] : memref<3x3x32xbf16, #tpu.memory_space<vmem>>, vector<1x3x32xbf16>
    %219 = vector.shape_cast %218 : vector<1x3x32xbf16> to vector<3x32xbf16>
    %220 = arith.truncf %216 : vector<32x32xf32> to vector<32x32xbf16>
    %cst_51 = arith.constant dense<0.000000e+00> : vector<3x32xf32>
    %221 = tpu.matmul %219, %220, %cst_51 {dimension_numbers = #tpu.dot_dimension_numbers<[1], [0], [0], [1], [0, 0, 1, 1], [], []>} : vector<3x32xbf16>, vector<32x32xbf16>, vector<3x32xf32> -> vector<3x32xf32>
    %222 = arith.index_cast %c2_i32 : i32 to index
    %c0_52 = arith.constant 0 : index
    %c0_53 = arith.constant 0 : index
    %223 = vector.load %arg7[%222, %c0_52, %c0_53] : memref<3x3x1xf32, #tpu.memory_space<vmem>>, vector<1x3x1xf32>
    %224 = vector.shape_cast %223 : vector<1x3x1xf32> to vector<3x1xf32>
    %225 = vector.broadcast %224 : vector<3x1xf32> to vector<3x32xf32>
    %226 = arith.addf %221, %225 : vector<3x32xf32>
    %cst_54 = arith.constant dense<0xFF800000> : vector<32xf32>
    %227 = vector.multi_reduction <maximumf>, %226, %cst_54 [0] : vector<3x32xf32> to vector<32xf32>
    %228 = vector.shape_cast %227 : vector<32xf32> to vector<1x32xf32>
    %229 = vector.broadcast %228 : vector<1x32xf32> to vector<3x32xf32>
    %230 = arith.subf %226, %229 : vector<3x32xf32>
    %231 = math.exp %230 : vector<3x32xf32>
    %cst_55 = arith.constant dense<0.000000e+00> : vector<32xf32>
    %232 = vector.multi_reduction <add>, %231, %cst_55 [0] : vector<3x32xf32> to vector<32xf32>
    %233 = vector.shape_cast %232 : vector<32xf32> to vector<1x32xf32>
    %234 = tpu.reciprocal %233 {approx = true} : vector<1x32xf32> -> vector<1x32xf32>
    %235 = vector.broadcast %234 : vector<1x32xf32> to vector<3x32xf32>
    %236 = arith.mulf %231, %235 : vector<3x32xf32>
    %237 = arith.addf %160, %236 : vector<3x32xf32>
    %c3_i32 = arith.constant 3 : i32
    %cst_56 = arith.constant 0.333333343 : f32
    %238 = vector.broadcast %cst_56 : f32 to vector<3x32xf32>
    %239 = arith.mulf %237, %238 : vector<3x32xf32>
    %c0_57 = arith.constant 0 : index
    %c0_58 = arith.constant 0 : index
    %c0_59 = arith.constant 0 : index
    %240 = vector.load %arg8[%c0_57, %c0_58, %c0_59] : memref<1x3x32xf32, #tpu.memory_space<vmem>>, vector<1x3x32xf32>
    %241 = vector.shape_cast %240 : vector<1x3x32xf32> to vector<3x32xf32>
    %242 = vector.shape_cast %239 : vector<3x32xf32> to vector<1x3x32xf32>
    tpu.vector_store %arg8[%c0_57, %c0_58, %c0_59], %242 {strides = array<i32>} : memref<1x3x32xf32, #tpu.memory_space<vmem>>, vector<1x3x32xf32>,
    return
  }
  func.func @transform_0(%arg0: i32) -> (i32, i32, i32) {
    %c0_i32 = arith.constant 0 : i32
    %c0_i32_0 = arith.constant 0 : i32
    %c0_i32_1 = arith.constant 0 : i32
    return %arg0, %c0_i32, %c0_i32_0 : i32, i32, i32
  }
  func.func @transform_1(%arg0: i32) -> (i32, i32, i32) {
    %c0_i32 = arith.constant 0 : i32
    %c0_i32_0 = arith.constant 0 : i32
    %c0_i32_1 = arith.constant 0 : i32
    %c0_i32_2 = arith.constant 0 : i32
    return %c0_i32, %c0_i32_0, %c0_i32_1 : i32, i32, i32
  }
  func.func @transform_2(%arg0: i32) -> (i32, i32, i32) {
    %c0_i32 = arith.constant 0 : i32
    %c0_i32_0 = arith.constant 0 : i32
    %c0_i32_1 = arith.constant 0 : i32
    %c0_i32_2 = arith.constant 0 : i32
    return %c0_i32, %c0_i32_0, %c0_i32_1 : i32, i32, i32
  }
  func.func @transform_3(%arg0: i32) -> (i32, i32, i32) {
    %c0_i32 = arith.constant 0 : i32
    %c0_i32_0 = arith.constant 0 : i32
    %c0_i32_1 = arith.constant 0 : i32
    %c0_i32_2 = arith.constant 0 : i32
    return %c0_i32, %c0_i32_0, %c0_i32_1 : i32, i32, i32
  }
  func.func @transform_4(%arg0: i32) -> (i32, i32, i32) {
    %c0_i32 = arith.constant 0 : i32
    %c0_i32_0 = arith.constant 0 : i32
    %c0_i32_1 = arith.constant 0 : i32
    %c0_i32_2 = arith.constant 0 : i32
    return %c0_i32, %c0_i32_0, %c0_i32_1 : i32, i32, i32
  }
  func.func @transform_5(%arg0: i32) -> (i32, i32, i32) {
    %c0_i32 = arith.constant 0 : i32
    %c0_i32_0 = arith.constant 0 : i32
    %c0_i32_1 = arith.constant 0 : i32
    %c0_i32_2 = arith.constant 0 : i32
    return %c0_i32, %c0_i32_0, %c0_i32_1 : i32, i32, i32
  }
  func.func @transform_6(%arg0: i32) -> (i32, i32, i32) {
    %c0_i32 = arith.constant 0 : i32
    %c0_i32_0 = arith.constant 0 : i32
    %c0_i32_1 = arith.constant 0 : i32
    %c0_i32_2 = arith.constant 0 : i32
    return %c0_i32, %c0_i32_0, %c0_i32_1 : i32, i32, i32
  }
  func.func @transform_7(%arg0: i32) -> (i32, i32, i32) {
    %c0_i32 = arith.constant 0 : i32
    %c0_i32_0 = arith.constant 0 : i32
    %c0_i32_1 = arith.constant 0 : i32
    return %arg0, %c0_i32, %c0_i32_0 : i32, i32, i32
  }
}

</mosaic_0001>

<llo_original>
// kernel: tpu_custom_call.1
$region0: #{tpu_custom_call.1}
  #allocation0 [shape = 'u32[]', space=smem, size = 0x4, offset = 0x4, fixed_abs, tag = 'smem constant byte address 0x4 - core index']
  #allocation1 [shape = 'u32[144,128]{1,0:T(1,128)}', space=vmem, size = 0x12000, scoped, tag = 'internal scratch']
  %s0 = inlined_call_operand.vmem [shape: f32[1,4,40], index: 0, kind: input, shape index: {}]
  %s1 = inlined_call_operand.vmem [shape: f32[3,32,4], index: 1, kind: input, shape index: {}]
  %s2 = inlined_call_operand.vmem [shape: f32[3,32,1], index: 2, kind: input, shape index: {}]
  %s3 = inlined_call_operand.vmem [shape: bf16[3,32,96], index: 3, kind: input, shape index: {}]
  %s4 = inlined_call_operand.vmem [shape: f32[3,32,1], index: 4, kind: input, shape index: {}]
  %s5 = inlined_call_operand.vmem [shape: bf16[3,3,32], index: 5, kind: input, shape index: {}]
  %s6 = inlined_call_operand.vmem [shape: f32[3,3,1], index: 6, kind: input, shape index: {}]
  %s7 = inlined_call_operand.vmem [shape: f32[1,3,32], index: 7, kind: output, shape index: {}]
  %s8 = sld [smem:[#allocation0]]
  $region38: #{tpu_custom_call.1} parent=0
    _
  %s10 = ssub.s32 1, %s8
  %s11 = scalar_select 0, %s10, %s8
  // Predicated region
  $region2: #{tpu_custom_call.1} parent=0 // pred_check
    _
  $region3: #{tpu_custom_call.1} parent=0 // pred_check_branch
    %13 = sbr.rel (0) target = $region5
  $region4: #{tpu_custom_call.1} parent=0 // pred_region
    _
  $region5: #{tpu_custom_call.1} parent=0 // pred_fallthru
    _
  // Predicated region
  $region6: #{tpu_custom_call.1} parent=0 // pred_check
    _
  $region7: #{tpu_custom_call.1} parent=0 // pred_check_branch
    %15 = sbr.rel (0) target = $region9
  $region8: #{tpu_custom_call.1} parent=0 // pred_region
    _
  $region9: #{tpu_custom_call.1} parent=0 // pred_fallthru
    _
  // Predicated region
  $region10: #{tpu_custom_call.1} parent=0 // pred_check
    _
  $region11: #{tpu_custom_call.1} parent=0 // pred_check_branch
    %17 = sbr.rel (0) target = $region13
  $region12: #{tpu_custom_call.1} parent=0 // pred_region
    _
  $region13: #{tpu_custom_call.1} parent=0 // pred_fallthru
    _
  // Predicated region
  $region14: #{tpu_custom_call.1} parent=0 // pred_check
    _
  $region15: #{tpu_custom_call.1} parent=0 // pred_check_branch
    %19 = sbr.rel (0) target = $region17
  $region16: #{tpu_custom_call.1} parent=0 // pred_region
    _
  $region17: #{tpu_custom_call.1} parent=0 // pred_fallthru
    _
  // Predicated region
  $region18: #{tpu_custom_call.1} parent=0 // pred_check
    _
  $region19: #{tpu_custom_call.1} parent=0 // pred_check_branch
    %21 = sbr.rel (0) target = $region21
  $region20: #{tpu_custom_call.1} parent=0 // pred_region
    _
  $region21: #{tpu_custom_call.1} parent=0 // pred_fallthru
    _
  // Predicated region
  $region22: #{tpu_custom_call.1} parent=0 // pred_check
    _
  $region23: #{tpu_custom_call.1} parent=0 // pred_check_branch
    %23 = sbr.rel (0) target = $region25
  $region24: #{tpu_custom_call.1} parent=0 // pred_region
    _
  $region25: #{tpu_custom_call.1} parent=0 // pred_fallthru
    _
  // Predicated region
  $region26: #{tpu_custom_call.1} parent=0 // pred_check
    _
  $region27: #{tpu_custom_call.1} parent=0 // pred_check_branch
    %25 = sbr.rel (0) target = $region29
  $region28: #{tpu_custom_call.1} parent=0 // pred_region
    _
  $region29: #{tpu_custom_call.1} parent=0 // pred_fallthru
    _
  %v27 = vld [vmem:[%s0] sm:$0xf]
  %v28 = vld [vmem:[%s1] sm:$0xff]
  %v29 = vld [vmem:[%s1 + $0x8] sm:$0xff]
  %v30 = vld [vmem:[%s1 + $0x10] sm:$0xff]
  %v31 = vld [vmem:[%s1 + $0x18] sm:$0xff]
  %v32 = vld [vmem:[%s2] sm:$0xff]
  %v33 = vld [vmem:[%s2 + $0x8] sm:$0xff]
  %v34 = vld [vmem:[%s2 + $0x10] sm:$0xff]
  %v35 = vld [vmem:[%s2 + $0x18] sm:$0xff]
  %37 = vset.pattern.permute.xlu0 0
  %38 = vperm.xlu0 %37, %v32
  %v39 = vpop.permute.xlu0 %38
  %42 = vset.pattern.permute.xlu0 0
  %43 = vperm.xlu0 %42, %v33
  %v44 = vpop.permute.xlu0 %43
  %47 = vset.pattern.permute.xlu0 0
  %48 = vperm.xlu0 %47, %v34
  %v49 = vpop.permute.xlu0 %48
  %52 = vset.pattern.permute.xlu0 0
  %53 = vperm.xlu0 %52, %v35
  %v54 = vpop.permute.xlu0 %53
  %57 = vset.pattern.permute.xlu0 0
  %58 = vperm.xlu0 %57, %v28
  %v59 = vpop.permute.xlu0 %58
  %62 = vset.pattern.permute.xlu0 0
  %63 = vperm.xlu0 %62, %v29
  %v64 = vpop.permute.xlu0 %63
  %67 = vset.pattern.permute.xlu0 0
  %68 = vperm.xlu0 %67, %v30
  %v69 = vpop.permute.xlu0 %68
  %72 = vset.pattern.permute.xlu0 0
  %73 = vperm.xlu0 %72, %v31
  %v74 = vpop.permute.xlu0 %73
  %v76 = vlaneseq
  %v77 = vshrl.u32 %v76, 7
  %v78 = vsub.s32 0, %v77
  %v79 = vrot.slane %v27, %v78
  %v80 = vmul.f32 %v59, %v79
  %v81 = vmul.f32 %v64, %v79
  %v82 = vmul.f32 %v69, %v79
  %v83 = vmul.f32 %v74, %v79
  %v84 = vadd.f32 %v39, %v80
  %v85 = vadd.f32 %v44, %v81
  %v86 = vadd.f32 %v49, %v82
  %v87 = vadd.f32 %v54, %v83
  %88 = vset.pattern.permute.xlu0 1
  %89 = vperm.xlu0 %88, %v28
  %v90 = vpop.permute.xlu0 %89
  %92 = vset.pattern.permute.xlu0 1
  %93 = vperm.xlu0 %92, %v29
  %v94 = vpop.permute.xlu0 %93
  %96 = vset.pattern.permute.xlu0 1
  %97 = vperm.xlu0 %96, %v30
  %v98 = vpop.permute.xlu0 %97
  %100 = vset.pattern.permute.xlu0 1
  %101 = vperm.xlu0 %100, %v31
  %v102 = vpop.permute.xlu0 %101
  %v104 = vlaneseq
  %v105 = vshrl.u32 %v104, 7
  %v106 = vsub.s32 1, %v105
  %v107 = vrot.slane %v27, %v106
  %v108 = vmul.f32 %v90, %v107
  %v109 = vmul.f32 %v94, %v107
  %v110 = vmul.f32 %v98, %v107
  %v111 = vmul.f32 %v102, %v107
  %v112 = vadd.f32 %v84, %v108
  %v113 = vadd.f32 %v85, %v109
  %v114 = vadd.f32 %v86, %v110
  %v115 = vadd.f32 %v87, %v111
  %116 = vset.pattern.permute.xlu0 2
  %117 = vperm.xlu0 %116, %v28
  %v118 = vpop.permute.xlu0 %117
  %120 = vset.pattern.permute.xlu0 2
  %121 = vperm.xlu0 %120, %v29
  %v122 = vpop.permute.xlu0 %121
  %124 = vset.pattern.permute.xlu0 2
  %125 = vperm.xlu0 %124, %v30
  %v126 = vpop.permute.xlu0 %125
  %128 = vset.pattern.permute.xlu0 2
  %129 = vperm.xlu0 %128, %v31
  %v130 = vpop.permute.xlu0 %129
  %v132 = vlaneseq
  %v133 = vshrl.u32 %v132, 7
  %v134 = vsub.s32 2, %v133
  %v135 = vrot.slane %v27, %v134
  %v136 = vmul.f32 %v118, %v135
  %v137 = vmul.f32 %v122, %v135
  %v138 = vmul.f32 %v126, %v135
  %v139 = vmul.f32 %v130, %v135
  %v140 = vadd.f32 %v112, %v136
  %v141 = vadd.f32 %v113, %v137
  %v142 = vadd.f32 %v114, %v138
  %v143 = vadd.f32 %v115, %v139
  %144 = vset.pattern.permute.xlu0 3
  %145 = vperm.xlu0 %144, %v28
  %v146 = vpop.permute.xlu0 %145
  %148 = vset.pattern.permute.xlu0 3
  %149 = vperm.xlu0 %148, %v29
  %v150 = vpop.permute.xlu0 %149
  %152 = vset.pattern.permute.xlu0 3
  %153 = vperm.xlu0 %152, %v30
  %v154 = vpop.permute.xlu0 %153
  %156 = vset.pattern.permute.xlu0 3
  %157 = vperm.xlu0 %156, %v31
  %v158 = vpop.permute.xlu0 %157
  %v160 = vlaneseq
  %v161 = vshrl.u32 %v160, 7
  %v162 = vsub.s32 3, %v161
  %v163 = vrot.slane %v27, %v162
  %v164 = vmul.f32 %v146, %v163
  %v165 = vmul.f32 %v150, %v163
  %v166 = vmul.f32 %v154, %v163
  %v167 = vmul.f32 %v158, %v163
  %v168 = vadd.f32 %v140, %v164
  %v169 = vadd.f32 %v141, %v165
  %v170 = vadd.f32 %v142, %v166
  %v171 = vadd.f32 %v143, %v167
  %v172 = vmax.f32 %v168, 0.0
  %v173 = vmax.f32 %v169, 0.0
  %v174 = vmax.f32 %v170, 0.0
  %v175 = vmax.f32 %v171, 0.0
  %180 = vrot.lane.b32.xlu0 %v172, 124
  %v181 = vpop.permute.xlu0 %180
  %182 = vrot.lane.b32.xlu0 %v173, 124
  %v183 = vpop.permute.xlu0 %182
  %184 = vrot.lane.b32.xlu0 %v174, 124
  %v185 = vpop.permute.xlu0 %184
  %186 = vrot.lane.b32.xlu0 %v175, 124
  %v187 = vpop.permute.xlu0 %186
  %vm192 = vcmask 130048
  %v193 = vsel %vm192, %v172, %v181
  %v194 = vsel %vm192, %v173, %v183
  %v195 = vsel %vm192, %v174, %v185
  %v196 = vsel %vm192, %v175, %v187
  %197 = vrot.lane.b32.xlu0 %v172, 126
  %v198 = vpop.permute.xlu0 %197
  %199 = vrot.lane.b32.xlu0 %v173, 126
  %v200 = vpop.permute.xlu0 %199
  %201 = vrot.lane.b32.xlu0 %v174, 126
  %v202 = vpop.permute.xlu0 %201
  %203 = vrot.lane.b32.xlu0 %v175, 126
  %v204 = vpop.permute.xlu0 %203
  %209 = vrot.lane.b32.xlu0 %v172, 122
  %v210 = vpop.permute.xlu0 %209
  %211 = vrot.lane.b32.xlu0 %v173, 122
  %v212 = vpop.permute.xlu0 %211
  %213 = vrot.lane.b32.xlu0 %v174, 122
  %v214 = vpop.permute.xlu0 %213
  %215 = vrot.lane.b32.xlu0 %v175, 122
  %v216 = vpop.permute.xlu0 %215
  %v221 = vsel %vm192, %v198, %v210
  %v222 = vsel %vm192, %v200, %v212
  %v223 = vsel %vm192, %v202, %v214
  %v224 = vsel %vm192, %v204, %v216
  %225 = vrot.lane.b32.xlu0 %v172, 120
  %v226 = vpop.permute.xlu0 %225
  %227 = vrot.lane.b32.xlu0 %v173, 120
  %v228 = vpop.permute.xlu0 %227
  %229 = vrot.lane.b32.xlu0 %v174, 120
  %v230 = vpop.permute.xlu0 %229
  %231 = vrot.lane.b32.xlu0 %v175, 120
  %v232 = vpop.permute.xlu0 %231
  %v237 = vsel %vm192, %v181, %v226
  %v238 = vsel %vm192, %v183, %v228
  %v239 = vsel %vm192, %v185, %v230
  %v240 = vsel %vm192, %v187, %v232
  %v241 = vld [vmem:[%s3] sm:$0xf]
  %v242 = vld [vmem:[%s3 + $0x4] sm:$0xf]
  %v243 = vld [vmem:[%s3 + $0x8] sm:$0xf]
  %v244 = vld [vmem:[%s3 + $0xc] sm:$0xf]
  %v245 = vpack.c.bf16 %v194, %v193
  %v246 = vpack.c.bf16 %v196, %v195
  %v247 = vpack.c.bf16 %v222, %v221
  %v248 = vpack.c.bf16 %v224, %v223
  %v249 = vpack.c.bf16 %v238, %v237
  %v250 = vpack.c.bf16 %v240, %v239
  %v251 = vld [vmem:[%s4] sm:$0xff]
  %v252 = vld [vmem:[%s4 + $0x8] sm:$0xff]
  %v253 = vld [vmem:[%s4 + $0x10] sm:$0xff]
  %v254 = vld [vmem:[%s4 + $0x18] sm:$0xff]
  %256 = vset.pattern.permute.xlu0 0
  %257 = vperm.xlu0 %256, %v251
  %v258 = vpop.permute.xlu0 %257
  %261 = vset.pattern.permute.xlu0 0
  %262 = vperm.xlu0 %261, %v252
  %v263 = vpop.permute.xlu0 %262
  %266 = vset.pattern.permute.xlu0 0
  %267 = vperm.xlu0 %266, %v253
  %v268 = vpop.permute.xlu0 %267
  %271 = vset.pattern.permute.xlu0 0
  %272 = vperm.xlu0 %271, %v254
  %v273 = vpop.permute.xlu0 %272
  %v279 = vunpack.c.l.b16 %v241
  %v280 = vunpack.c.l.b16 %v242
  %v281 = vunpack.c.l.b16 %v243
  %v282 = vunpack.c.l.b16 %v244
  %v283 = vpack.c.b16 %v280, %v279
  %v284 = vpack.c.b16 %v282, %v281
  %vm285 = vcmask 785408
  %v287 = vsel %vm285, %v283, 0
  %v290 = vsel %vm285, %v284, 0
  %292 = vmatprep.subr.bf16.mxu0 0
  %293 = vmatpush1.bf16.msra.mxu0 %v245
  %294 = vmatprep.subr.bf16.mxu0 0
  %295 = vmatpush1.bf16.msra.mxu0 %v246
  %296 = vmatprep.subr.bf16.mxu0 0
  %297 = vmatpush1.bf16.msra.mxu0 %v247
  %298 = vmatprep.subr.bf16.mxu0 0
  %299 = vmatpush1.bf16.msra.mxu0 %v248
  %300 = vmatprep.subr.bf16.mxu0 0
  %301 = vmatpush1.bf16.msra.mxu0 %v249
  %302 = vmatprep.subr.bf16.mxu0 0
  %303 = vmatpush1.bf16.msra.mxu0 %v250
  %304 = vmatprep.subr.bf16.mxu0 0
  %305 = vmatpush1.bf16.msra.mxu0 0
  %306 = vmatprep.subr.bf16.mxu0 0
  %307 = vmatpush1.bf16.msra.mxu0 0
  %308 = vmatprep.subr.bf16.mxu0 0
  %309 = vmatpush1.bf16.msra.mxu0 0
  %310 = vmatprep.subr.bf16.mxu0 0
  %311 = vmatpush1.bf16.msra.mxu0 0
  %312 = vmatprep.subr.bf16.mxu0 0
  %313 = vmatpush1.bf16.msra.mxu0 0
  %314 = vmatprep.subr.bf16.mxu0 0
  %315 = vmatpush1.bf16.msra.mxu0 0
  %316 = vmatprep.subr.bf16.mxu0 0
  %317 = vmatpush1.bf16.msra.mxu0 0
  %318 = vmatprep.subr.bf16.mxu0 0
  %319 = vmatpush1.bf16.msra.mxu0 0
  %320 = vmatprep.subr.bf16.mxu0 0
  %321 = vmatpush1.bf16.msra.mxu0 0
  %322 = vmatprep.subr.bf16.mxu0 0
  %323 = vmatpush1.bf16.msra.mxu0 0
  %324 = vmatprep.mubr.bf16.mxu0 0
  %325 = vmatmul.mubr.bf16.gmra.mrb[0].mxu0 %v287
  %v326 = vpop.f32.mrb[0].mxu0
  %v327 = vadd.f32 %v258, %v326
  %v328 = vpop.f32.mrb[0].mxu0
  %v329 = vpop.f32.mrb[0].mxu0
  %v330 = vadd.f32 %v263, %v329
  %v331 = vpop.f32.mrb[0].mxu0
  %332 = vmatprep.mubr.bf16.mxu0 0
  %333 = vmatmul.mubr.bf16.gmra.mrb[0].mxu0 %v290
  %v334 = vpop.f32.mrb[0].mxu0
  %v335 = vadd.f32 %v268, %v334
  %v336 = vpop.f32.mrb[0].mxu0
  %v337 = vpop.f32.mrb[0].mxu0
  %v338 = vadd.f32 %v273, %v337
  %v339 = vpop.f32.mrb[0].mxu0
  %340 = vdwg.mxu0
  %v341 = vmax.f32 %v327, 0.0
  %v342 = vmax.f32 %v330, 0.0
  %v343 = vmax.f32 %v335, 0.0
  %v344 = vmax.f32 %v338, 0.0
  %v345 = vadd.f32 %v341, %v221
  %v346 = vadd.f32 %v342, %v222
  %v347 = vadd.f32 %v343, %v223
  %v348 = vadd.f32 %v344, %v224
  %v349 = vld [vmem:[%s5] sm:$0x3]
  %v350 = vpack.c.bf16 %v346, %v345
  %v351 = vpack.c.bf16 %v348, %v347
  %v352 = vld [vmem:[%s6] sm:$0x7]
  %354 = vset.pattern.permute.xlu0 0
  %355 = vperm.xlu0 %354, %v352
  %v356 = vpop.permute.xlu0 %355
  %vm358 = vcmask 261120
  %v360 = vsel %vm358, %v349, 0
  %362 = vmatprep.subr.bf16.mxu0 0
  %363 = vmatpush1.bf16.msra.mxu0 %v350
  %364 = vmatprep.subr.bf16.mxu0 0
  %365 = vmatpush1.bf16.msra.mxu0 %v351
  %366 = vmatprep.subr.bf16.mxu0 0
  %367 = vmatpush1.bf16.msra.mxu0 0
  %368 = vmatprep.subr.bf16.mxu0 0
  %369 = vmatpush1.bf16.msra.mxu0 0
  %370 = vmatprep.subr.bf16.mxu0 0
  %371 = vmatpush1.bf16.msra.mxu0 0
  %372 = vmatprep.subr.bf16.mxu0 0
  %373 = vmatpush1.bf16.msra.mxu0 0
  %374 = vmatprep.subr.bf16.mxu0 0
  %375 = vmatpush1.bf16.msra.mxu0 0
  %376 = vmatprep.subr.bf16.mxu0 0
  %377 = vmatpush1.bf16.msra.mxu0 0
  %378 = vmatprep.subr.bf16.mxu0 0
  %379 = vmatpush1.bf16.msra.mxu0 0
  %380 = vmatprep.subr.bf16.mxu0 0
  %381 = vmatpush1.bf16.msra.mxu0 0
  %382 = vmatprep.subr.bf16.mxu0 0
  %383 = vmatpush1.bf16.msra.mxu0 0
  %384 = vmatprep.subr.bf16.mxu0 0
  %385 = vmatpush1.bf16.msra.mxu0 0
  %386 = vmatprep.subr.bf16.mxu0 0
  %387 = vmatpush1.bf16.msra.mxu0 0
  %388 = vmatprep.subr.bf16.mxu0 0
  %389 = vmatpush1.bf16.msra.mxu0 0
  %390 = vmatprep.subr.bf16.mxu0 0
  %391 = vmatpush1.bf16.msra.mxu0 0
  %392 = vmatprep.subr.bf16.mxu0 0
  %393 = vmatpush1.bf16.msra.mxu0 0
  %394 = vmatprep.mubr.bf16.mxu0 0
  %395 = vmatmul.mubr.bf16.gmra.mrb[0].mxu0 %v360
  %v396 = vpop.f32.mrb[0].mxu0
  %v397 = vadd.f32 %v356, %v396
  %v398 = vpop.f32.mrb[0].mxu0
  %v399 = vpop.f32.mrb[0].mxu0
  %v400 = vpop.f32.mrb[0].mxu0
  %401 = vdwg.mxu0
  %vm402 = vcmask 256000
  %v403 = vsel %vm402, %v397, -inf
  %v404 = vrot.slane %v403, 4
  %v405 = vmax.f32 %v403, %v404
  %v406 = vrot.slane %v405, 2
  %v407 = vmax.f32 %v405, %v406
  %v408 = vrot.slane %v407, 1
  %v409 = vmax.f32 %v407, %v408
  %v410 = vsub.f32 %v397, %v409
  %v411 = vmul.f32 %v410, 1.442695
  %v412 = vpow.pop %v411
  %v413 = vsel %vm402, %v412, 0.0
  %v414 = vrot.slane %v413, 4
  %v415 = vadd.f32 %v413, %v414
  %v416 = vrot.slane %v415, 2
  %v417 = vadd.f32 %v415, %v416
  %v418 = vrot.slane %v417, 1
  %v419 = vadd.f32 %v417, %v418
  %v420 = vrcp.pop %v419
  %v421 = vmul.f32 %v412, %v420
  %v422 = vadd.f32 %v421, 0.0
  %s423 = scalar_lea.vmem %s1, 32
  %v424 = vld [vmem:[%s423] sm:$0xff]
  %v425 = vld [vmem:[%s423 + $0x8] sm:$0xff]
  %v426 = vld [vmem:[%s423 + $0x10] sm:$0xff]
  %v427 = vld [vmem:[%s423 + $0x18] sm:$0xff]
  %s428 = scalar_lea.vmem %s2, 32
  %v429 = vld [vmem:[%s428] sm:$0xff]
  %v430 = vld [vmem:[%s428 + $0x8] sm:$0xff]
  %v431 = vld [vmem:[%s428 + $0x10] sm:$0xff]
  %v432 = vld [vmem:[%s428 + $0x18] sm:$0xff]
  %434 = vset.pattern.permute.xlu0 0
  %435 = vperm.xlu0 %434, %v429
  %v436 = vpop.permute.xlu0 %435
  %439 = vset.pattern.permute.xlu0 0
  %440 = vperm.xlu0 %439, %v430
  %v441 = vpop.permute.xlu0 %440
  %444 = vset.pattern.permute.xlu0 0
  %445 = vperm.xlu0 %444, %v431
  %v446 = vpop.permute.xlu0 %445
  %449 = vset.pattern.permute.xlu0 0
  %450 = vperm.xlu0 %449, %v432
  %v451 = vpop.permute.xlu0 %450
  %454 = vset.pattern.permute.xlu0 0
  %455 = vperm.xlu0 %454, %v424
  %v456 = vpop.permute.xlu0 %455
  %459 = vset.pattern.permute.xlu0 0
  %460 = vperm.xlu0 %459, %v425
  %v461 = vpop.permute.xlu0 %460
  %464 = vset.pattern.permute.xlu0 0
  %465 = vperm.xlu0 %464, %v426
  %v466 = vpop.permute.xlu0 %465
  %469 = vset.pattern.permute.xlu0 0
  %470 = vperm.xlu0 %469, %v427
  %v471 = vpop.permute.xlu0 %470
  %v473 = vmul.f32 %v456, %v79
  %v474 = vmul.f32 %v461, %v79
  %v475 = vmul.f32 %v466, %v79
  %v476 = vmul.f32 %v471, %v79
  %v477 = vadd.f32 %v436, %v473
  %v478 = vadd.f32 %v441, %v474
  %v479 = vadd.f32 %v446, %v475
  %v480 = vadd.f32 %v451, %v476
  %481 = vset.pattern.permute.xlu0 1
  %482 = vperm.xlu0 %481, %v424
  %v483 = vpop.permute.xlu0 %482
  %485 = vset.pattern.permute.xlu0 1
  %486 = vperm.xlu0 %485, %v425
  %v487 = vpop.permute.xlu0 %486
  %489 = vset.pattern.permute.xlu0 1
  %490 = vperm.xlu0 %489, %v426
  %v491 = vpop.permute.xlu0 %490
  %493 = vset.pattern.permute.xlu0 1
  %494 = vperm.xlu0 %493, %v427
  %v495 = vpop.permute.xlu0 %494
  %v497 = vmul.f32 %v483, %v107
  %v498 = vmul.f32 %v487, %v107
  %v499 = vmul.f32 %v491, %v107
  %v500 = vmul.f32 %v495, %v107
  %v501 = vadd.f32 %v477, %v497
  %v502 = vadd.f32 %v478, %v498
  %v503 = vadd.f32 %v479, %v499
  %v504 = vadd.f32 %v480, %v500
  %505 = vset.pattern.permute.xlu0 2
  %506 = vperm.xlu0 %505, %v424
  %v507 = vpop.permute.xlu0 %506
  %509 = vset.pattern.permute.xlu0 2
  %510 = vperm.xlu0 %509, %v425
  %v511 = vpop.permute.xlu0 %510
  %513 = vset.pattern.permute.xlu0 2
  %514 = vperm.xlu0 %513, %v426
  %v515 = vpop.permute.xlu0 %514
  %517 = vset.pattern.permute.xlu0 2
  %518 = vperm.xlu0 %517, %v427
  %v519 = vpop.permute.xlu0 %518
  %v521 = vmul.f32 %v507, %v135
  %v522 = vmul.f32 %v511, %v135
  %v523 = vmul.f32 %v515, %v135
  %v524 = vmul.f32 %v519, %v135
  %v525 = vadd.f32 %v501, %v521
  %v526 = vadd.f32 %v502, %v522
  %v527 = vadd.f32 %v503, %v523
  %v528 = vadd.f32 %v504, %v524
  %529 = vset.pattern.permute.xlu0 3
  %530 = vperm.xlu0 %529, %v424
  %v531 = vpop.permute.xlu0 %530
  %533 = vset.pattern.permute.xlu0 3
  %534 = vperm.xlu0 %533, %v425
  %v535 = vpop.permute.xlu0 %534
  %537 = vset.pattern.permute.xlu0 3
  %538 = vperm.xlu0 %537, %v426
  %v539 = vpop.permute.xlu0 %538
  %541 = vset.pattern.permute.xlu0 3
  %542 = vperm.xlu0 %541, %v427
  %v543 = vpop.permute.xlu0 %542
  %v545 = vmul.f32 %v531, %v163
  %v546 = vmul.f32 %v535, %v163
  %v547 = vmul.f32 %v539, %v163
  %v548 = vmul.f32 %v543, %v163
  %v549 = vadd.f32 %v525, %v545
  %v550 = vadd.f32 %v526, %v546
  %v551 = vadd.f32 %v527, %v547
  %v552 = vadd.f32 %v528, %v548
  %v553 = vmax.f32 %v549, 0.0
  %v554 = vmax.f32 %v550, 0.0
  %v555 = vmax.f32 %v551, 0.0
  %v556 = vmax.f32 %v552, 0.0
  %561 = vrot.lane.b32.xlu0 %v553, 124
  %v562 = vpop.permute.xlu0 %561
  %563 = vrot.lane.b32.xlu0 %v554, 124
  %v564 = vpop.permute.xlu0 %563
  %565 = vrot.lane.b32.xlu0 %v555, 124
  %v566 = vpop.permute.xlu0 %565
  %567 = vrot.lane.b32.xlu0 %v556, 124
  %v568 = vpop.permute.xlu0 %567
  %v573 = vsel %vm192, %v553, %v562
  %v574 = vsel %vm192, %v554, %v564
  %v575 = vsel %vm192, %v555, %v566
  %v576 = vsel %vm192, %v556, %v568
  %577 = vrot.lane.b32.xlu0 %v553, 126
  %v578 = vpop.permute.xlu0 %577
  %579 = vrot.lane.b32.xlu0 %v554, 126
  %v580 = vpop.permute.xlu0 %579
  %581 = vrot.lane.b32.xlu0 %v555, 126
  %v582 = vpop.permute.xlu0 %581
  %583 = vrot.lane.b32.xlu0 %v556, 126
  %v584 = vpop.permute.xlu0 %583
  %589 = vrot.lane.b32.xlu0 %v553, 122
  %v590 = vpop.permute.xlu0 %589
  %591 = vrot.lane.b32.xlu0 %v554, 122
  %v592 = vpop.permute.xlu0 %591
  %593 = vrot.lane.b32.xlu0 %v555, 122
  %v594 = vpop.permute.xlu0 %593
  %595 = vrot.lane.b32.xlu0 %v556, 122
  %v596 = vpop.permute.xlu0 %595
  %v601 = vsel %vm192, %v578, %v590
  %v602 = vsel %vm192, %v580, %v592
  %v603 = vsel %vm192, %v582, %v594
  %v604 = vsel %vm192, %v584, %v596
  %605 = vrot.lane.b32.xlu0 %v553, 120
  %v606 = vpop.permute.xlu0 %605
  %607 = vrot.lane.b32.xlu0 %v554, 120
  %v608 = vpop.permute.xlu0 %607
  %609 = vrot.lane.b32.xlu0 %v555, 120
  %v610 = vpop.permute.xlu0 %609
  %611 = vrot.lane.b32.xlu0 %v556, 120
  %v612 = vpop.permute.xlu0 %611
  %v617 = vsel %vm192, %v562, %v606
  %v618 = vsel %vm192, %v564, %v608
  %v619 = vsel %vm192, %v566, %v610
  %v620 = vsel %vm192, %v568, %v612
  %s621 = scalar_lea.vmem %s3, 16
  %v622 = vld [vmem:[%s621] sm:$0xf]
  %v623 = vld [vmem:[%s621 + $0x4] sm:$0xf]
  %v624 = vld [vmem:[%s621 + $0x8] sm:$0xf]
  %v625 = vld [vmem:[%s621 + $0xc] sm:$0xf]
  %v626 = vpack.c.bf16 %v574, %v573
  %v627 = vpack.c.bf16 %v576, %v575
  %v628 = vpack.c.bf16 %v602, %v601
  %v629 = vpack.c.bf16 %v604, %v603
  %v630 = vpack.c.bf16 %v618, %v617
  %v631 = vpack.c.bf16 %v620, %v619
  %s632 = scalar_lea.vmem %s4, 32
  %v633 = vld [vmem:[%s632] sm:$0xff]
  %v634 = vld [vmem:[%s632 + $0x8] sm:$0xff]
  %v635 = vld [vmem:[%s632 + $0x10] sm:$0xff]
  %v636 = vld [vmem:[%s632 + $0x18] sm:$0xff]
  %638 = vset.pattern.permute.xlu0 0
  %639 = vperm.xlu0 %638, %v633
  %v640 = vpop.permute.xlu0 %639
  %643 = vset.pattern.permute.xlu0 0
  %644 = vperm.xlu0 %643, %v634
  %v645 = vpop.permute.xlu0 %644
  %648 = vset.pattern.permute.xlu0 0
  %649 = vperm.xlu0 %648, %v635
  %v650 = vpop.permute.xlu0 %649
  %653 = vset.pattern.permute.xlu0 0
  %654 = vperm.xlu0 %653, %v636
  %v655 = vpop.permute.xlu0 %654
  %v661 = vunpack.c.l.b16 %v622
  %v662 = vunpack.c.l.b16 %v623
  %v663 = vunpack.c.l.b16 %v624
  %v664 = vunpack.c.l.b16 %v625
  %v665 = vpack.c.b16 %v662, %v661
  %v666 = vpack.c.b16 %v664, %v663
  %v668 = vsel %vm285, %v665, 0
  %v671 = vsel %vm285, %v666, 0
  %673 = vmatprep.subr.bf16.mxu0 0
  %674 = vmatpush1.bf16.msra.mxu0 %v626
  %675 = vmatprep.subr.bf16.mxu0 0
  %676 = vmatpush1.bf16.msra.mxu0 %v627
  %677 = vmatprep.subr.bf16.mxu0 0
  %678 = vmatpush1.bf16.msra.mxu0 %v628
  %679 = vmatprep.subr.bf16.mxu0 0
  %680 = vmatpush1.bf16.msra.mxu0 %v629
  %681 = vmatprep.subr.bf16.mxu0 0
  %682 = vmatpush1.bf16.msra.mxu0 %v630
  %683 = vmatprep.subr.bf16.mxu0 0
  %684 = vmatpush1.bf16.msra.mxu0 %v631
  %685 = vmatprep.subr.bf16.mxu0 0
  %686 = vmatpush1.bf16.msra.mxu0 0
  %687 = vmatprep.subr.bf16.mxu0 0
  %688 = vmatpush1.bf16.msra.mxu0 0
  %689 = vmatprep.subr.bf16.mxu0 0
  %690 = vmatpush1.bf16.msra.mxu0 0
  %691 = vmatprep.subr.bf16.mxu0 0
  %692 = vmatpush1.bf16.msra.mxu0 0
  %693 = vmatprep.subr.bf16.mxu0 0
  %694 = vmatpush1.bf16.msra.mxu0 0
  %695 = vmatprep.subr.bf16.mxu0 0
  %696 = vmatpush1.bf16.msra.mxu0 0
  %697 = vmatprep.subr.bf16.mxu0 0
  %698 = vmatpush1.bf16.msra.mxu0 0
  %699 = vmatprep.subr.bf16.mxu0 0
  %700 = vmatpush1.bf16.msra.mxu0 0
  %701 = vmatprep.subr.bf16.mxu0 0
  %702 = vmatpush1.bf16.msra.mxu0 0
  %703 = vmatprep.subr.bf16.mxu0 0
  %704 = vmatpush1.bf16.msra.mxu0 0
  %705 = vmatprep.mubr.bf16.mxu0 0
  %706 = vmatmul.mubr.bf16.gmra.mrb[0].mxu0 %v668
  %v707 = vpop.f32.mrb[0].mxu0
  %v708 = vadd.f32 %v640, %v707
  %v709 = vpop.f32.mrb[0].mxu0
  %v710 = vpop.f32.mrb[0].mxu0
  %v711 = vadd.f32 %v645, %v710
  %v712 = vpop.f32.mrb[0].mxu0
  %713 = vmatprep.mubr.bf16.mxu0 0
  %714 = vmatmul.mubr.bf16.gmra.mrb[0].mxu0 %v671
  %v715 = vpop.f32.mrb[0].mxu0
  %v716 = vadd.f32 %v650, %v715
  %v717 = vpop.f32.mrb[0].mxu0
  %v718 = vpop.f32.mrb[0].mxu0
  %v719 = vadd.f32 %v655, %v718
  %v720 = vpop.f32.mrb[0].mxu0
  %721 = vdwg.mxu0
  %v722 = vmax.f32 %v708, 0.0
  %v723 = vmax.f32 %v711, 0.0
  %v724 = vmax.f32 %v716, 0.0
  %v725 = vmax.f32 %v719, 0.0
  %v726 = vadd.f32 %v722, %v601
  %v727 = vadd.f32 %v723, %v602
  %v728 = vadd.f32 %v724, %v603
  %v729 = vadd.f32 %v725, %v604
  %s730 = scalar_lea.vmem %s5, 2
  %v731 = vld [vmem:[%s730] sm:$0x3]
  %v732 = vpack.c.bf16 %v727, %v726
  %v733 = vpack.c.bf16 %v729, %v728
  %s734 = scalar_lea.vmem %s6, 4
  %v735 = vld [vmem:[%s734] sm:$0x7]
  %737 = vset.pattern.permute.xlu0 0
  %738 = vperm.xlu0 %737, %v735
  %v739 = vpop.permute.xlu0 %738
  %v742 = vsel %vm358, %v731, 0
  %744 = vmatprep.subr.bf16.mxu0 0
  %745 = vmatpush1.bf16.msra.mxu0 %v732
  %746 = vmatprep.subr.bf16.mxu0 0
  %747 = vmatpush1.bf16.msra.mxu0 %v733
  %748 = vmatprep.subr.bf16.mxu0 0
  %749 = vmatpush1.bf16.msra.mxu0 0
  %750 = vmatprep.subr.bf16.mxu0 0
  %751 = vmatpush1.bf16.msra.mxu0 0
  %752 = vmatprep.subr.bf16.mxu0 0
  %753 = vmatpush1.bf16.msra.mxu0 0
  %754 = vmatprep.subr.bf16.mxu0 0
  %755 = vmatpush1.bf16.msra.mxu0 0
  %756 = vmatprep.subr.bf16.mxu0 0
  %757 = vmatpush1.bf16.msra.mxu0 0
  %758 = vmatprep.subr.bf16.mxu0 0
  %759 = vmatpush1.bf16.msra.mxu0 0
  %760 = vmatprep.subr.bf16.mxu0 0
  %761 = vmatpush1.bf16.msra.mxu0 0
  %762 = vmatprep.subr.bf16.mxu0 0
  %763 = vmatpush1.bf16.msra.mxu0 0
  %764 = vmatprep.subr.bf16.mxu0 0
  %765 = vmatpush1.bf16.msra.mxu0 0
  %766 = vmatprep.subr.bf16.mxu0 0
  %767 = vmatpush1.bf16.msra.mxu0 0
  %768 = vmatprep.subr.bf16.mxu0 0
  %769 = vmatpush1.bf16.msra.mxu0 0
  %770 = vmatprep.subr.bf16.mxu0 0
  %771 = vmatpush1.bf16.msra.mxu0 0
  %772 = vmatprep.subr.bf16.mxu0 0
  %773 = vmatpush1.bf16.msra.mxu0 0
  %774 = vmatprep.subr.bf16.mxu0 0
  %775 = vmatpush1.bf16.msra.mxu0 0
  %776 = vmatprep.mubr.bf16.mxu0 0
  %777 = vmatmul.mubr.bf16.gmra.mrb[0].mxu0 %v742
  %v778 = vpop.f32.mrb[0].mxu0
  %v779 = vadd.f32 %v739, %v778
  %v780 = vpop.f32.mrb[0].mxu0
  %v781 = vpop.f32.mrb[0].mxu0
  %v782 = vpop.f32.mrb[0].mxu0
  %783 = vdwg.mxu0
  %v784 = vsel %vm402, %v779, -inf
  %v785 = vrot.slane %v784, 4
  %v786 = vmax.f32 %v784, %v785
  %v787 = vrot.slane %v786, 2
  %v788 = vmax.f32 %v786, %v787
  %v789 = vrot.slane %v788, 1
  %v790 = vmax.f32 %v788, %v789
  %v791 = vsub.f32 %v779, %v790
  %v792 = vmul.f32 %v791, 1.442695
  %v793 = vpow.pop %v792
  %v794 = vsel %vm402, %v793, 0.0
  %v795 = vrot.slane %v794, 4
  %v796 = vadd.f32 %v794, %v795
  %v797 = vrot.slane %v796, 2
  %v798 = vadd.f32 %v796, %v797
  %v799 = vrot.slane %v798, 1
  %v800 = vadd.f32 %v798, %v799
  %v801 = vrcp.pop %v800
  %v802 = vmul.f32 %v793, %v801
  %v803 = vadd.f32 %v422, %v802
  %s804 = scalar_lea.vmem %s1, 64
  %v805 = vld [vmem:[%s804] sm:$0xff]
  %v806 = vld [vmem:[%s804 + $0x8] sm:$0xff]
  %v807 = vld [vmem:[%s804 + $0x10] sm:$0xff]
  %v808 = vld [vmem:[%s804 + $0x18] sm:$0xff]
  %s809 = scalar_lea.vmem %s2, 64
  %v810 = vld [vmem:[%s809] sm:$0xff]
  %v811 = vld [vmem:[%s809 + $0x8] sm:$0xff]
  %v812 = vld [vmem:[%s809 + $0x10] sm:$0xff]
  %v813 = vld [vmem:[%s809 + $0x18] sm:$0xff]
  %815 = vset.pattern.permute.xlu0 0
  %816 = vperm.xlu0 %815, %v810
  %v817 = vpop.permute.xlu0 %816
  %820 = vset.pattern.permute.xlu0 0
  %821 = vperm.xlu0 %820, %v811
  %v822 = vpop.permute.xlu0 %821
  %825 = vset.pattern.permute.xlu0 0
  %826 = vperm.xlu0 %825, %v812
  %v827 = vpop.permute.xlu0 %826
  %830 = vset.pattern.permute.xlu0 0
  %831 = vperm.xlu0 %830, %v813
  %v832 = vpop.permute.xlu0 %831
  %835 = vset.pattern.permute.xlu0 0
  %836 = vperm.xlu0 %835, %v805
  %v837 = vpop.permute.xlu0 %836
  %840 = vset.pattern.permute.xlu0 0
  %841 = vperm.xlu0 %840, %v806
  %v842 = vpop.permute.xlu0 %841
  %845 = vset.pattern.permute.xlu0 0
  %846 = vperm.xlu0 %845, %v807
  %v847 = vpop.permute.xlu0 %846
  %850 = vset.pattern.permute.xlu0 0
  %851 = vperm.xlu0 %850, %v808
  %v852 = vpop.permute.xlu0 %851
  %v854 = vmul.f32 %v837, %v79
  %v855 = vmul.f32 %v842, %v79
  %v856 = vmul.f32 %v847, %v79
  %v857 = vmul.f32 %v852, %v79
  %v858 = vadd.f32 %v817, %v854
  %v859 = vadd.f32 %v822, %v855
  %v860 = vadd.f32 %v827, %v856
  %v861 = vadd.f32 %v832, %v857
  %862 = vset.pattern.permute.xlu0 1
  %863 = vperm.xlu0 %862, %v805
  %v864 = vpop.permute.xlu0 %863
  %866 = vset.pattern.permute.xlu0 1
  %867 = vperm.xlu0 %866, %v806
  %v868 = vpop.permute.xlu0 %867
  %870 = vset.pattern.permute.xlu0 1
  %871 = vperm.xlu0 %870, %v807
  %v872 = vpop.permute.xlu0 %871
  %874 = vset.pattern.permute.xlu0 1
  %875 = vperm.xlu0 %874, %v808
  %v876 = vpop.permute.xlu0 %875
  %v878 = vmul.f32 %v864, %v107
  %v879 = vmul.f32 %v868, %v107
  %v880 = vmul.f32 %v872, %v107
  %v881 = vmul.f32 %v876, %v107
  %v882 = vadd.f32 %v858, %v878
  %v883 = vadd.f32 %v859, %v879
  %v884 = vadd.f32 %v860, %v880
  %v885 = vadd.f32 %v861, %v881
  %886 = vset.pattern.permute.xlu0 2
  %887 = vperm.xlu0 %886, %v805
  %v888 = vpop.permute.xlu0 %887
  %890 = vset.pattern.permute.xlu0 2
  %891 = vperm.xlu0 %890, %v806
  %v892 = vpop.permute.xlu0 %891
  %894 = vset.pattern.permute.xlu0 2
  %895 = vperm.xlu0 %894, %v807
  %v896 = vpop.permute.xlu0 %895
  %898 = vset.pattern.permute.xlu0 2
  %899 = vperm.xlu0 %898, %v808
  %v900 = vpop.permute.xlu0 %899
  %v902 = vmul.f32 %v888, %v135
  %v903 = vmul.f32 %v892, %v135
  %v904 = vmul.f32 %v896, %v135
  %v905 = vmul.f32 %v900, %v135
  %v906 = vadd.f32 %v882, %v902
  %v907 = vadd.f32 %v883, %v903
  %v908 = vadd.f32 %v884, %v904
  %v909 = vadd.f32 %v885, %v905
  %910 = vset.pattern.permute.xlu0 3
  %911 = vperm.xlu0 %910, %v805
  %v912 = vpop.permute.xlu0 %911
  %914 = vset.pattern.permute.xlu0 3
  %915 = vperm.xlu0 %914, %v806
  %v916 = vpop.permute.xlu0 %915
  %918 = vset.pattern.permute.xlu0 3
  %919 = vperm.xlu0 %918, %v807
  %v920 = vpop.permute.xlu0 %919
  %922 = vset.pattern.permute.xlu0 3
  %923 = vperm.xlu0 %922, %v808
  %v924 = vpop.permute.xlu0 %923
  %v926 = vmul.f32 %v912, %v163
  %v927 = vmul.f32 %v916, %v163
  %v928 = vmul.f32 %v920, %v163
  %v929 = vmul.f32 %v924, %v163
  %v930 = vadd.f32 %v906, %v926
  %v931 = vadd.f32 %v907, %v927
  %v932 = vadd.f32 %v908, %v928
  %v933 = vadd.f32 %v909, %v929
  %v934 = vmax.f32 %v930, 0.0
  %v935 = vmax.f32 %v931, 0.0
  %v936 = vmax.f32 %v932, 0.0
  %v937 = vmax.f32 %v933, 0.0
  %942 = vrot.lane.b32.xlu0 %v934, 124
  %v943 = vpop.permute.xlu0 %942
  %944 = vrot.lane.b32.xlu0 %v935, 124
  %v945 = vpop.permute.xlu0 %944
  %946 = vrot.lane.b32.xlu0 %v936, 124
  %v947 = vpop.permute.xlu0 %946
  %948 = vrot.lane.b32.xlu0 %v937, 124
  %v949 = vpop.permute.xlu0 %948
  %v954 = vsel %vm192, %v934, %v943
  %v955 = vsel %vm192, %v935, %v945
  %v956 = vsel %vm192, %v936, %v947
  %v957 = vsel %vm192, %v937, %v949
  %958 = vrot.lane.b32.xlu0 %v934, 126
  %v959 = vpop.permute.xlu0 %958
  %960 = vrot.lane.b32.xlu0 %v935, 126
  %v961 = vpop.permute.xlu0 %960
  %962 = vrot.lane.b32.xlu0 %v936, 126
  %v963 = vpop.permute.xlu0 %962
  %964 = vrot.lane.b32.xlu0 %v937, 126
  %v965 = vpop.permute.xlu0 %964
  %970 = vrot.lane.b32.xlu0 %v934, 122
  %v971 = vpop.permute.xlu0 %970
  %972 = vrot.lane.b32.xlu0 %v935, 122
  %v973 = vpop.permute.xlu0 %972
  %974 = vrot.lane.b32.xlu0 %v936, 122
  %v975 = vpop.permute.xlu0 %974
  %976 = vrot.lane.b32.xlu0 %v937, 122
  %v977 = vpop.permute.xlu0 %976
  %v982 = vsel %vm192, %v959, %v971
  %v983 = vsel %vm192, %v961, %v973
  %v984 = vsel %vm192, %v963, %v975
  %v985 = vsel %vm192, %v965, %v977
  %986 = vrot.lane.b32.xlu0 %v934, 120
  %v987 = vpop.permute.xlu0 %986
  %988 = vrot.lane.b32.xlu0 %v935, 120
  %v989 = vpop.permute.xlu0 %988
  %990 = vrot.lane.b32.xlu0 %v936, 120
  %v991 = vpop.permute.xlu0 %990
  %992 = vrot.lane.b32.xlu0 %v937, 120
  %v993 = vpop.permute.xlu0 %992
  %v998 = vsel %vm192, %v943, %v987
  %v999 = vsel %vm192, %v945, %v989
  %v1000 = vsel %vm192, %v947, %v991
  %v1001 = vsel %vm192, %v949, %v993
  %s1002 = scalar_lea.vmem %s3, 32
  %v1003 = vld [vmem:[%s1002] sm:$0xf]
  %v1004 = vld [vmem:[%s1002 + $0x4] sm:$0xf]
  %v1005 = vld [vmem:[%s1002 + $0x8] sm:$0xf]
  %v1006 = vld [vmem:[%s1002 + $0xc] sm:$0xf]
  %v1007 = vpack.c.bf16 %v955, %v954
  %v1008 = vpack.c.bf16 %v957, %v956
  %v1009 = vpack.c.bf16 %v983, %v982
  %v1010 = vpack.c.bf16 %v985, %v984
  %v1011 = vpack.c.bf16 %v999, %v998
  %v1012 = vpack.c.bf16 %v1001, %v1000
  %s1013 = scalar_lea.vmem %s4, 64
  %v1014 = vld [vmem:[%s1013] sm:$0xff]
  %v1015 = vld [vmem:[%s1013 + $0x8] sm:$0xff]
  %v1016 = vld [vmem:[%s1013 + $0x10] sm:$0xff]
  %v1017 = vld [vmem:[%s1013 + $0x18] sm:$0xff]
  %1019 = vset.pattern.permute.xlu0 0
  %1020 = vperm.xlu0 %1019, %v1014
  %v1021 = vpop.permute.xlu0 %1020
  %1024 = vset.pattern.permute.xlu0 0
  %1025 = vperm.xlu0 %1024, %v1015
  %v1026 = vpop.permute.xlu0 %1025
  %1029 = vset.pattern.permute.xlu0 0
  %1030 = vperm.xlu0 %1029, %v1016
  %v1031 = vpop.permute.xlu0 %1030
  %1034 = vset.pattern.permute.xlu0 0
  %1035 = vperm.xlu0 %1034, %v1017
  %v1036 = vpop.permute.xlu0 %1035
  %v1042 = vunpack.c.l.b16 %v1003
  %v1043 = vunpack.c.l.b16 %v1004
  %v1044 = vunpack.c.l.b16 %v1005
  %v1045 = vunpack.c.l.b16 %v1006
  %v1046 = vpack.c.b16 %v1043, %v1042
  %v1047 = vpack.c.b16 %v1045, %v1044
  %v1049 = vsel %vm285, %v1046, 0
  %v1052 = vsel %vm285, %v1047, 0
  %1054 = vmatprep.subr.bf16.mxu0 0
  %1055 = vmatpush1.bf16.msra.mxu0 %v1007
  %1056 = vmatprep.subr.bf16.mxu0 0
  %1057 = vmatpush1.bf16.msra.mxu0 %v1008
  %1058 = vmatprep.subr.bf16.mxu0 0
  %1059 = vmatpush1.bf16.msra.mxu0 %v1009
  %1060 = vmatprep.subr.bf16.mxu0 0
  %1061 = vmatpush1.bf16.msra.mxu0 %v1010
  %1062 = vmatprep.subr.bf16.mxu0 0
  %1063 = vmatpush1.bf16.msra.mxu0 %v1011
  %1064 = vmatprep.subr.bf16.mxu0 0
  %1065 = vmatpush1.bf16.msra.mxu0 %v1012
  %1066 = vmatprep.subr.bf16.mxu0 0
  %1067 = vmatpush1.bf16.msra.mxu0 0
  %1068 = vmatprep.subr.bf16.mxu0 0
  %1069 = vmatpush1.bf16.msra.mxu0 0
  %1070 = vmatprep.subr.bf16.mxu0 0
  %1071 = vmatpush1.bf16.msra.mxu0 0
  %1072 = vmatprep.subr.bf16.mxu0 0
  %1073 = vmatpush1.bf16.msra.mxu0 0
  %1074 = vmatprep.subr.bf16.mxu0 0
  %1075 = vmatpush1.bf16.msra.mxu0 0
  %1076 = vmatprep.subr.bf16.mxu0 0
  %1077 = vmatpush1.bf16.msra.mxu0 0
  %1078 = vmatprep.subr.bf16.mxu0 0
  %1079 = vmatpush1.bf16.msra.mxu0 0
  %1080 = vmatprep.subr.bf16.mxu0 0
  %1081 = vmatpush1.bf16.msra.mxu0 0
  %1082 = vmatprep.subr.bf16.mxu0 0
  %1083 = vmatpush1.bf16.msra.mxu0 0
  %1084 = vmatprep.subr.bf16.mxu0 0
  %1085 = vmatpush1.bf16.msra.mxu0 0
  %1086 = vmatprep.mubr.bf16.mxu0 0
  %1087 = vmatmul.mubr.bf16.gmra.mrb[0].mxu0 %v1049
  %v1088 = vpop.f32.mrb[0].mxu0
  %v1089 = vadd.f32 %v1021, %v1088
  %v1090 = vpop.f32.mrb[0].mxu0
  %v1091 = vpop.f32.mrb[0].mxu0
  %v1092 = vadd.f32 %v1026, %v1091
  %v1093 = vpop.f32.mrb[0].mxu0
  %1094 = vmatprep.mubr.bf16.mxu0 0
  %1095 = vmatmul.mubr.bf16.gmra.mrb[0].mxu0 %v1052
  %v1096 = vpop.f32.mrb[0].mxu0
  %v1097 = vadd.f32 %v1031, %v1096
  %v1098 = vpop.f32.mrb[0].mxu0
  %v1099 = vpop.f32.mrb[0].mxu0
  %v1100 = vadd.f32 %v1036, %v1099
  %v1101 = vpop.f32.mrb[0].mxu0
  %1102 = vdwg.mxu0
  %v1103 = vmax.f32 %v1089, 0.0
  %v1104 = vmax.f32 %v1092, 0.0
  %v1105 = vmax.f32 %v1097, 0.0
  %v1106 = vmax.f32 %v1100, 0.0
  %v1107 = vadd.f32 %v1103, %v982
  %v1108 = vadd.f32 %v1104, %v983
  %v1109 = vadd.f32 %v1105, %v984
  %v1110 = vadd.f32 %v1106, %v985
  %s1111 = scalar_lea.vmem %s5, 4
  %v1112 = vld [vmem:[%s1111] sm:$0x3]
  %v1113 = vpack.c.bf16 %v1108, %v1107
  %v1114 = vpack.c.bf16 %v1110, %v1109
  %s1115 = scalar_lea.vmem %s6, 8
  %v1116 = vld [vmem:[%s1115] sm:$0x7]
  %1118 = vset.pattern.permute.xlu0 0
  %1119 = vperm.xlu0 %1118, %v1116
  %v1120 = vpop.permute.xlu0 %1119
  %v1123 = vsel %vm358, %v1112, 0
  %1125 = vmatprep.subr.bf16.mxu0 0
  %1126 = vmatpush1.bf16.msra.mxu0 %v1113
  %1127 = vmatprep.subr.bf16.mxu0 0
  %1128 = vmatpush1.bf16.msra.mxu0 %v1114
  %1129 = vmatprep.subr.bf16.mxu0 0
  %1130 = vmatpush1.bf16.msra.mxu0 0
  %1131 = vmatprep.subr.bf16.mxu0 0
  %1132 = vmatpush1.bf16.msra.mxu0 0
  %1133 = vmatprep.subr.bf16.mxu0 0
  %1134 = vmatpush1.bf16.msra.mxu0 0
  %1135 = vmatprep.subr.bf16.mxu0 0
  %1136 = vmatpush1.bf16.msra.mxu0 0
  %1137 = vmatprep.subr.bf16.mxu0 0
  %1138 = vmatpush1.bf16.msra.mxu0 0
  %1139 = vmatprep.subr.bf16.mxu0 0
  %1140 = vmatpush1.bf16.msra.mxu0 0
  %1141 = vmatprep.subr.bf16.mxu0 0
  %1142 = vmatpush1.bf16.msra.mxu0 0
  %1143 = vmatprep.subr.bf16.mxu0 0
  %1144 = vmatpush1.bf16.msra.mxu0 0
  %1145 = vmatprep.subr.bf16.mxu0 0
  %1146 = vmatpush1.bf16.msra.mxu0 0
  %1147 = vmatprep.subr.bf16.mxu0 0
  %1148 = vmatpush1.bf16.msra.mxu0 0
  %1149 = vmatprep.subr.bf16.mxu0 0
  %1150 = vmatpush1.bf16.msra.mxu0 0
  %1151 = vmatprep.subr.bf16.mxu0 0
  %1152 = vmatpush1.bf16.msra.mxu0 0
  %1153 = vmatprep.subr.bf16.mxu0 0
  %1154 = vmatpush1.bf16.msra.mxu0 0
  %1155 = vmatprep.subr.bf16.mxu0 0
  %1156 = vmatpush1.bf16.msra.mxu0 0
  %1157 = vmatprep.mubr.bf16.mxu0 0
  %1158 = vmatmul.mubr.bf16.gmra.mrb[0].mxu0 %v1123
  %v1159 = vpop.f32.mrb[0].mxu0
  %v1160 = vadd.f32 %v1120, %v1159
  %v1161 = vpop.f32.mrb[0].mxu0
  %v1162 = vpop.f32.mrb[0].mxu0
  %v1163 = vpop.f32.mrb[0].mxu0
  %1164 = vdwg.mxu0
  %v1165 = vsel %vm402, %v1160, -inf
  %v1166 = vrot.slane %v1165, 4
  %v1167 = vmax.f32 %v1165, %v1166
  %v1168 = vrot.slane %v1167, 2
  %v1169 = vmax.f32 %v1167, %v1168
  %v1170 = vrot.slane %v1169, 1
  %v1171 = vmax.f32 %v1169, %v1170
  %v1172 = vsub.f32 %v1160, %v1171
  %v1173 = vmul.f32 %v1172, 1.442695
  %v1174 = vpow.pop %v1173
  %v1175 = vsel %vm402, %v1174, 0.0
  %v1176 = vrot.slane %v1175, 4
  %v1177 = vadd.f32 %v1175, %v1176
  %v1178 = vrot.slane %v1177, 2
  %v1179 = vadd.f32 %v1177, %v1178
  %v1180 = vrot.slane %v1179, 1
  %v1181 = vadd.f32 %v1179, %v1180
  %v1182 = vrcp.pop %v1181
  %v1183 = vmul.f32 %v1174, %v1182
  %v1184 = vadd.f32 %v803, %v1183
  %v1185 = vmul.f32 %v1184, 0.33333334
  %1186 = vst.msk [vmem:[%s7] sm:$0x7] %vm402, %v1185
  // Predicated region
  $region30: #{tpu_custom_call.1} parent=0 // pred_check
    _
  $region31: #{tpu_custom_call.1} parent=0 // pred_check_branch
    %1188 = sbr.rel (0) target = $region33
  $region32: #{tpu_custom_call.1} parent=0 // pred_region
    _
  $region33: #{tpu_custom_call.1} parent=0 // pred_fallthru
    _
  // Predicated region
  $region34: #{tpu_custom_call.1} parent=0 // pred_check
    _
  $region35: #{tpu_custom_call.1} parent=0 // pred_check_branch
    %1190 = sbr.rel (0) target = $region37
  $region36: #{tpu_custom_call.1} parent=0 // pred_region
    _
  $region37: #{tpu_custom_call.1} parent=0 // pred_fallthru
    _

</llo_original>
